<compile_context>
chip_gen: v7x
topology: tpu7x:2x2x1
jax: 0.10.0
libtpu: 0.0.40
codegen_flags: <defaults>
</compile_context>

<pallas_src>
import functools

import jax
import jax.numpy as jnp
from jax.experimental import pallas as pl
from jax.experimental.pallas import tpu as pltpu

LANE = 128
SUBLANE = 8


def epsnet_kernel(x_ref, w1_ref, b1_ref, w2_ref, b2_ref, o_ref, *, eps, T):
    # ---- l1 with the 2x / +eps fold done in the wrapper ----
    #   c0 = (2*x) @ W1 + (2*b1 + eps) = 2*(x @ W1 + b1) + eps
    c0 = jnp.dot(x_ref[...], w1_ref[...], preferred_element_type=jnp.float32)
    c0 = c0 + b1_ref[...]                 # (1, H) bias broadcast, hoisted once

    # ---- eps*sin(z)^2 recurrence via the half-angle identity ----
    #   u_t = 2*(x + y_{t-1});  u_1 = 2*x = c0 - eps
    #   u_{t+1} = c0 - eps*cos(u_t)        (1 transcendental + 1 mul + 1 sub / step)
    u = c0 - eps
    for _ in range(T - 1):                # static Python unroll; T is an int
        u = c0 - eps * jnp.cos(u)

    # Final step in the sin form: avoids the 1 - cos(u) cancellation near u ~= 0.
    s = jnp.sin(0.5 * u)
    y = eps * (s * s)

    # ---- l2 (lane-dense padded output columns) ----
    out = jnp.dot(y.astype(w2_ref.dtype), w2_ref[...],
                  preferred_element_type=jnp.float32)
    o_ref[...] = (out + b2_ref[...]).astype(o_ref.dtype)


def _tpu_flavor():
    try:
        kind = jax.devices()[0].device_kind.lower()
    except Exception:
        return ""
    for tag in ("v7", "v6", "v5"):
        if tag in kind:
            return tag
    return ""


def _round_up(x, m):
    return pl.cdiv(x, m) * m


def _block_diag(w, pack):
    if pack == 1:
        return w
    return jnp.kron(jnp.eye(pack, dtype=w.dtype), w)


def _tile_cols(b, pack):
    b = b.reshape(1, -1)
    return b if pack == 1 else jnp.tile(b, (1, pack))


def epsnet_forward(x, w1, b1, w2, b2, *, eps=0.1, T=10, max_block_batch=None):
    """EpsNet forward. Weights are (in_features, out_features): y = x @ W + b."""
    assert T >= 1
    batch, i_size = x.shape
    h_size = w1.shape[1]
    o_size = w2.shape[1]
    eps = float(eps)
    T = int(T)

    # ---- generation-aware budgets ----
    flavor = _tpu_flavor()
    is_v7 = flavor == "v7"
    big_vmem = flavor in ("v5", "v6")               # 128 MiB physical VMEM chips
    vmem_limit = (64 if big_vmem else 32) * 1024 * 1024
    act_budget = (24 if big_vmem else 8) * 1024 * 1024
    if max_block_batch is None:
        max_block_batch = 4096 if big_vmem else 1024

    # ---- lane packing of the recurrence (h_size < 128) ----
    pack = max(1, LANE // h_size) if h_size < LANE else 1
    row_align = pack * SUBLANE                      # unpacked rows per packed sublane group
    o_group = max(1, LANE // pack)                  # pad o_size so pack*o_pad is lane-dense
    o_pad = _round_up(o_size, o_group)

    # ---- parameter prep (once, in the wrapper; amortized / constant-folded) ----
    w1p = _block_diag(2.0 * w1.astype(jnp.float32), pack)                    # (pack*I, pack*H)
    b1p = _tile_cols(2.0 * b1.astype(jnp.float32).reshape(1, h_size) + eps, pack)
    w2_pad = w2.astype(jnp.float32)
    b2_pad = b2.astype(jnp.float32).reshape(1, o_size)
    if o_pad != o_size:
        w2_pad = jnp.zeros((h_size, o_pad), jnp.float32).at[:, :o_size].set(w2_pad)
        b2_pad = jnp.zeros((1, o_pad), jnp.float32).at[:, :o_size].set(b2_pad)
    w2p = _block_diag(w2_pad, pack)                                          # (pack*H, pack*o_pad)
    b2p = _tile_cols(b2_pad, pack)

    # ---- batch tiling: derive tb from the actual batch ----
    bytes_per_row = 4 * (2 * i_size + 2 * o_pad + 4 * h_size)   # streams + f32 temps
    tb_cap = max(row_align, min(max_block_batch, act_budget // max(bytes_per_row, 1)))
    tb_cap = (tb_cap // row_align) * row_align
    n_tiles = pl.cdiv(batch, tb_cap)
    if is_v7 and batch >= 2 * row_align:
        # 2 TensorCores: keep the parallel batch grid >= 2 tiles and even.
        n_tiles = max(2, n_tiles)
        n_tiles += n_tiles % 2
    tb = _round_up(pl.cdiv(batch, n_tiles), row_align)
    b_pad = n_tiles * tb

    if b_pad != batch:
        x = jnp.zeros((b_pad, i_size), x.dtype).at[:batch, :].set(x)
    xp = x.reshape(b_pad // pack, pack * i_size)    # free row-major reshape in HBM
    tbp = tb // pack                                # packed rows per tile

    ip, hp, op = pack * i_size, pack * h_size, pack * o_pad
    kernel = functools.partial(epsnet_kernel, eps=eps, T=T)

    cost = pl.CostEstimate(
        flops=int(2 * b_pad * pack * (i_size * h_size + h_size * o_pad)
                  + 3 * T * b_pad * h_size),
        transcendentals=int(T * b_pad * h_size),
        bytes_accessed=int(4 * (b_pad * (i_size + o_pad)
                                + pack * (ip * h_size + hp * o_pad) + hp + op)),
    )

    def call(single_buffer_weights):
        def const_spec(shape):
            if single_buffer_weights:
                # Constant-index weights/biases: no double buffering needed.
                return pl.BlockSpec(shape, lambda i: (0, 0),
                                    pipeline_mode=pl.Buffered(1))
            return pl.BlockSpec(shape, lambda i: (0, 0))

        return pl.pallas_call(
            kernel,
            out_shape=jax.ShapeDtypeStruct((b_pad // pack, op), x.dtype),
            grid_spec=pltpu.PrefetchScalarGridSpec(
                num_scalar_prefetch=0,
                grid=(n_tiles,),
                in_specs=[
                    pl.BlockSpec((tbp, ip), lambda i: (i, 0)),   # activation stream
                    const_spec((ip, hp)),                        # W1' (block-diag, 2x fold)
                    const_spec((1, hp)),                         # b1' (2*b1 + eps, tiled)
                    const_spec((hp, op)),                        # W2' (block-diag, padded)
                    const_spec((1, op)),                         # b2' (padded, tiled)
                ],
                out_specs=pl.BlockSpec((tbp, op), lambda i: (i, 0)),
            ),
            compiler_params=pltpu.CompilerParams(
                dimension_semantics=("parallel",),   # v7x: shard batch grid over 2 TCs
                vmem_limit_bytes=vmem_limit,
            ),
            cost_estimate=cost,
        )(xp, w1p, b1p, w2p, b2p)

    try:
        out = call(single_buffer_weights=True)
    except Exception:
        # Some Pallas versions may reject pipeline_mode=pl.Buffered(1); the default
        # double-buffered path is functionally identical (weights are tiny anyway).
        out = call(single_buffer_weights=False)

    out = out.reshape(b_pad, o_pad)                  # free row-major un-pack
    return out[:batch, :o_size]


def epsnet_reference(x, w1, b1, w2, b2, *, eps=0.1, T=10):
    h = x @ w1 + b1.reshape(1, -1)
    s = jnp.sin(h)
    y = eps * s * s
    for _ in range(T - 1):
        s = jnp.sin(h + y)
        y = eps * s * s
    return y @ w2 + b2.reshape(1, -1)


if __name__ == "__main__":
    key = jax.random.PRNGKey(0)
    kx, kw1, kb1, kw2, kb2, kx2, kw1c, kw2c = jax.random.split(key, 8)

    # Small shapes consistent with EpsNet(i_size, h_size, o_size): (batch, i_size) -> (batch, o_size).
    batch, i_size, h_size, o_size = 2, 32, 32, 3
    eps, T = 0.1, 10

    x = jax.random.normal(kx, (batch, i_size), dtype=jnp.float32)
    # Synthetic parameters, stored (in, out) for x @ W.
    w1 = jax.random.normal(kw1, (i_size, h_size), dtype=jnp.float32) * 0.05
    b1 = jax.random.normal(kb1, (1, h_size), dtype=jnp.float32) * 0.05
    w2 = jax.random.normal(kw2, (h_size, o_size), dtype=jnp.float32) * 0.05
    b2 = jax.random.normal(kb2, (1, o_size), dtype=jnp.float32) * 0.05

    # Case 1: tiny batch, lane-packed (pack = 128 // 32 = 4) path.
    out = jax.block_until_ready(epsnet_forward(x, w1, b1, w2, b2, eps=eps, T=T))
    ref = epsnet_reference(x, w1, b1, w2, b2, eps=eps, T=T)
    assert out.shape == (batch, o_size)
    assert jnp.allclose(out, ref, atol=1e-5, rtol=1e-5), (out, ref)

    # Case 2: multi-tile batch grid + padding / un-packing path.
    big_batch = 600
    xb = jax.random.normal(kx2, (big_batch, i_size), dtype=jnp.float32)
    out_b = jax.block_until_ready(
        epsnet_forward(xb, w1, b1, w2, b2, eps=eps, T=T, max_block_batch=256))
    ref_b = epsnet_reference(xb, w1, b1, w2, b2, eps=eps, T=T)
    assert out_b.shape == (big_batch, o_size)
    assert jnp.allclose(out_b, ref_b, atol=1e-5, rtol=1e-5)

    # Case 3: h_size >= 128 exercises the unpacked (pack = 1) path.
    i2, h2, o2 = 64, 128, 5
    w1c = jax.random.normal(kw1c, (i2, h2), dtype=jnp.float32) * 0.05
    b1c = jnp.zeros((1, h2), jnp.float32)
    w2c = jax.random.normal(kw2c, (h2, o2), dtype=jnp.float32) * 0.05
    b2c = jnp.zeros((1, o2), jnp.float32)
    xc = jax.random.normal(kx, (16, i2), dtype=jnp.float32)
    out_c = jax.block_until_ready(epsnet_forward(xc, w1c, b1c, w2c, b2c, eps=eps, T=3))
    ref_c = epsnet_reference(xc, w1c, b1c, w2c, b2c, eps=eps, T=3)
    assert out_c.shape == (16, o2)
    assert jnp.allclose(out_c, ref_c, atol=1e-5, rtol=1e-5)

    print("KERNEL_OK")
</pallas_src>

<mosaic_0001>
module attributes {stable_mosaic.version = 11 : i64} {
  func.func @epsnet_kernel(%arg0: i32, %arg1: memref<8x128xf32, #tpu.memory_space<vmem>>, %arg2: memref<128x128xf32, #tpu.memory_space<vmem>>, %arg3: memref<1x128xf32, #tpu.memory_space<vmem>>, %arg4: memref<128x128xf32, #tpu.memory_space<vmem>>, %arg5: memref<1x128xf32, #tpu.memory_space<vmem>>, %arg6: memref<8x128xf32, #tpu.memory_space<vmem>>) attributes {dimension_semantics = [#tpu.dimension_semantics<parallel>], iteration_bounds = array<i64: 1>, scalar_prefetch = 0 : i64, scratch_operands = 0 : i64, tpu.core_type = #tpu.core_type<tc>, window_params = [{transform_indices = @transform_0, window_bounds = array<i64: 8, 128>}, {pipeline_mode = #tpu.pipeline_mode<synchronous>, transform_indices = @transform_1, window_bounds = array<i64: 128, 128>}, {pipeline_mode = #tpu.pipeline_mode<synchronous>, transform_indices = @transform_2, window_bounds = array<i64: 1, 128>}, {pipeline_mode = #tpu.pipeline_mode<synchronous>, transform_indices = @transform_3, window_bounds = array<i64: 128, 128>}, {pipeline_mode = #tpu.pipeline_mode<synchronous>, transform_indices = @transform_4, window_bounds = array<i64: 1, 128>}, {transform_indices = @transform_5, window_bounds = array<i64: 8, 128>}]} {
    %c0 = arith.constant 0 : index
    %c0_0 = arith.constant 0 : index
    %0 = vector.load %arg1[%c0, %c0_0] : memref<8x128xf32, #tpu.memory_space<vmem>>, vector<8x128xf32>
    %c0_1 = arith.constant 0 : index
    %c0_2 = arith.constant 0 : index
    %1 = vector.load %arg2[%c0_1, %c0_2] : memref<128x128xf32, #tpu.memory_space<vmem>>, vector<128x128xf32>
    %cst = arith.constant dense<0.000000e+00> : vector<8x128xf32>
    %2 = tpu.matmul %0, %1, %cst {dimension_numbers = #tpu.dot_dimension_numbers<[1], [0], [0], [1], [0, 0, 1, 1], [], []>} : vector<8x128xf32>, vector<128x128xf32>, vector<8x128xf32> -> vector<8x128xf32>
    %c0_3 = arith.constant 0 : index
    %c0_4 = arith.constant 0 : index
    %3 = vector.load %arg3[%c0_3, %c0_4] : memref<1x128xf32, #tpu.memory_space<vmem>>, vector<1x128xf32>
    %4 = vector.broadcast %3 : vector<1x128xf32> to vector<8x128xf32>
    %5 = arith.addf %2, %4 : vector<8x128xf32>
    %cst_5 = arith.constant 1.000000e-01 : f32
    %6 = vector.broadcast %cst_5 : f32 to vector<8x128xf32>
    %7 = arith.subf %5, %6 : vector<8x128xf32>
    %8 = math.cos %7 : vector<8x128xf32>
    %cst_6 = arith.constant 1.000000e-01 : f32
    %9 = vector.broadcast %cst_6 : f32 to vector<8x128xf32>
    %10 = arith.mulf %9, %8 : vector<8x128xf32>
    %11 = arith.subf %5, %10 : vector<8x128xf32>
    %12 = math.cos %11 : vector<8x128xf32>
    %cst_7 = arith.constant 1.000000e-01 : f32
    %13 = vector.broadcast %cst_7 : f32 to vector<8x128xf32>
    %14 = arith.mulf %13, %12 : vector<8x128xf32>
    %15 = arith.subf %5, %14 : vector<8x128xf32>
    %16 = math.cos %15 : vector<8x128xf32>
    %cst_8 = arith.constant 1.000000e-01 : f32
    %17 = vector.broadcast %cst_8 : f32 to vector<8x128xf32>
    %18 = arith.mulf %17, %16 : vector<8x128xf32>
    %19 = arith.subf %5, %18 : vector<8x128xf32>
    %20 = math.cos %19 : vector<8x128xf32>
    %cst_9 = arith.constant 1.000000e-01 : f32
    %21 = vector.broadcast %cst_9 : f32 to vector<8x128xf32>
    %22 = arith.mulf %21, %20 : vector<8x128xf32>
    %23 = arith.subf %5, %22 : vector<8x128xf32>
    %24 = math.cos %23 : vector<8x128xf32>
    %cst_10 = arith.constant 1.000000e-01 : f32
    %25 = vector.broadcast %cst_10 : f32 to vector<8x128xf32>
    %26 = arith.mulf %25, %24 : vector<8x128xf32>
    %27 = arith.subf %5, %26 : vector<8x128xf32>
    %28 = math.cos %27 : vector<8x128xf32>
    %cst_11 = arith.constant 1.000000e-01 : f32
    %29 = vector.broadcast %cst_11 : f32 to vector<8x128xf32>
    %30 = arith.mulf %29, %28 : vector<8x128xf32>
    %31 = arith.subf %5, %30 : vector<8x128xf32>
    %32 = math.cos %31 : vector<8x128xf32>
    %cst_12 = arith.constant 1.000000e-01 : f32
    %33 = vector.broadcast %cst_12 : f32 to vector<8x128xf32>
    %34 = arith.mulf %33, %32 : vector<8x128xf32>
    %35 = arith.subf %5, %34 : vector<8x128xf32>
    %36 = math.cos %35 : vector<8x128xf32>
    %cst_13 = arith.constant 1.000000e-01 : f32
    %37 = vector.broadcast %cst_13 : f32 to vector<8x128xf32>
    %38 = arith.mulf %37, %36 : vector<8x128xf32>
    %39 = arith.subf %5, %38 : vector<8x128xf32>
    %40 = math.cos %39 : vector<8x128xf32>
    %cst_14 = arith.constant 1.000000e-01 : f32
    %41 = vector.broadcast %cst_14 : f32 to vector<8x128xf32>
    %42 = arith.mulf %41, %40 : vector<8x128xf32>
    %43 = arith.subf %5, %42 : vector<8x128xf32>
    %cst_15 = arith.constant 5.000000e-01 : f32
    %44 = vector.broadcast %cst_15 : f32 to vector<8x128xf32>
    %45 = arith.mulf %44, %43 : vector<8x128xf32>
    %46 = math.sin %45 : vector<8x128xf32>
    %47 = arith.mulf %46, %46 : vector<8x128xf32>
    %cst_16 = arith.constant 1.000000e-01 : f32
    %48 = vector.broadcast %cst_16 : f32 to vector<8x128xf32>
    %49 = arith.mulf %48, %47 : vector<8x128xf32>
    %c0_17 = arith.constant 0 : index
    %c0_18 = arith.constant 0 : index
    %50 = vector.load %arg4[%c0_17, %c0_18] : memref<128x128xf32, #tpu.memory_space<vmem>>, vector<128x128xf32>
    %cst_19 = arith.constant dense<0.000000e+00> : vector<8x128xf32>
    %51 = tpu.matmul %49, %50, %cst_19 {dimension_numbers = #tpu.dot_dimension_numbers<[1], [0], [0], [1], [0, 0, 1, 1], [], []>} : vector<8x128xf32>, vector<128x128xf32>, vector<8x128xf32> -> vector<8x128xf32>
    %c0_20 = arith.constant 0 : index
    %c0_21 = arith.constant 0 : index
    %52 = vector.load %arg5[%c0_20, %c0_21] : memref<1x128xf32, #tpu.memory_space<vmem>>, vector<1x128xf32>
    %53 = vector.broadcast %52 : vector<1x128xf32> to vector<8x128xf32>
    %54 = arith.addf %51, %53 : vector<8x128xf32>
    %c0_22 = arith.constant 0 : index
    %c0_23 = arith.constant 0 : index
    %55 = vector.load %arg6[%c0_22, %c0_23] : memref<8x128xf32, #tpu.memory_space<vmem>>, vector<8x128xf32>
    tpu.vector_store %arg6[%c0_22, %c0_23], %54 {strides = array<i32>} : memref<8x128xf32, #tpu.memory_space<vmem>>, vector<8x128xf32>,
    return
  }
  func.func @transform_0(%arg0: i32) -> (i32, i32) {
    %c0_i32 = arith.constant 0 : i32
    %c0_i32_0 = arith.constant 0 : i32
    return %arg0, %c0_i32 : i32, i32
  }
  func.func @transform_1(%arg0: i32) -> (i32, i32) {
    %c0_i32 = arith.constant 0 : i32
    %c0_i32_0 = arith.constant 0 : i32
    %c0_i32_1 = arith.constant 0 : i32
    return %c0_i32, %c0_i32_0 : i32, i32
  }
  func.func @transform_2(%arg0: i32) -> (i32, i32) {
    %c0_i32 = arith.constant 0 : i32
    %c0_i32_0 = arith.constant 0 : i32
    %c0_i32_1 = arith.constant 0 : i32
    return %c0_i32, %c0_i32_0 : i32, i32
  }
  func.func @transform_3(%arg0: i32) -> (i32, i32) {
    %c0_i32 = arith.constant 0 : i32
    %c0_i32_0 = arith.constant 0 : i32
    %c0_i32_1 = arith.constant 0 : i32
    return %c0_i32, %c0_i32_0 : i32, i32
  }
  func.func @transform_4(%arg0: i32) -> (i32, i32) {
    %c0_i32 = arith.constant 0 : i32
    %c0_i32_0 = arith.constant 0 : i32
    %c0_i32_1 = arith.constant 0 : i32
    return %c0_i32, %c0_i32_0 : i32, i32
  }
  func.func @transform_5(%arg0: i32) -> (i32, i32) {
    %c0_i32 = arith.constant 0 : i32
    %c0_i32_0 = arith.constant 0 : i32
    return %arg0, %c0_i32 : i32, i32
  }
}

module attributes {stable_mosaic.version = 11 : i64} {
  func.func @epsnet_kernel(%arg0: i32, %arg1: memref<8x128xf32, #tpu.memory_space<vmem>>, %arg2: memref<128x128xf32, #tpu.memory_space<vmem>>, %arg3: memref<1x128xf32, #tpu.memory_space<vmem>>, %arg4: memref<128x128xf32, #tpu.memory_space<vmem>>, %arg5: memref<1x128xf32, #tpu.memory_space<vmem>>, %arg6: memref<8x128xf32, #tpu.memory_space<vmem>>) attributes {dimension_semantics = [#tpu.dimension_semantics<parallel>], iteration_bounds = array<i64: 1>, scalar_prefetch = 0 : i64, scratch_operands = 0 : i64, tpu.core_type = #tpu.core_type<tc>, window_params = [{transform_indices = @transform_0, window_bounds = array<i64: 8, 128>}, {pipeline_mode = #tpu.pipeline_mode<synchronous>, transform_indices = @transform_1, window_bounds = array<i64: 128, 128>}, {pipeline_mode = #tpu.pipeline_mode<synchronous>, transform_indices = @transform_2, window_bounds = array<i64: 1, 128>}, {pipeline_mode = #tpu.pipeline_mode<synchronous>, transform_indices = @transform_3, window_bounds = array<i64: 128, 128>}, {pipeline_mode = #tpu.pipeline_mode<synchronous>, transform_indices = @transform_4, window_bounds = array<i64: 1, 128>}, {transform_indices = @transform_5, window_bounds = array<i64: 8, 128>}]} {
    %c0 = arith.constant 0 : index
    %c0_0 = arith.constant 0 : index
    %0 = vector.load %arg1[%c0, %c0_0] : memref<8x128xf32, #tpu.memory_space<vmem>>, vector<8x128xf32>
    %c0_1 = arith.constant 0 : index
    %c0_2 = arith.constant 0 : index
    %1 = vector.load %arg2[%c0_1, %c0_2] : memref<128x128xf32, #tpu.memory_space<vmem>>, vector<128x128xf32>
    %cst = arith.constant dense<0.000000e+00> : vector<8x128xf32>
    %2 = tpu.matmul %0, %1, %cst {dimension_numbers = #tpu.dot_dimension_numbers<[1], [0], [0], [1], [0, 0, 1, 1], [], []>} : vector<8x128xf32>, vector<128x128xf32>, vector<8x128xf32> -> vector<8x128xf32>
    %c0_3 = arith.constant 0 : index
    %c0_4 = arith.constant 0 : index
    %3 = vector.load %arg3[%c0_3, %c0_4] : memref<1x128xf32, #tpu.memory_space<vmem>>, vector<1x128xf32>
    %4 = vector.broadcast %3 : vector<1x128xf32> to vector<8x128xf32>
    %5 = arith.addf %2, %4 : vector<8x128xf32>
    %cst_5 = arith.constant 1.000000e-01 : f32
    %6 = vector.broadcast %cst_5 : f32 to vector<8x128xf32>
    %7 = arith.subf %5, %6 : vector<8x128xf32>
    %8 = math.cos %7 : vector<8x128xf32>
    %cst_6 = arith.constant 1.000000e-01 : f32
    %9 = vector.broadcast %cst_6 : f32 to vector<8x128xf32>
    %10 = arith.mulf %9, %8 : vector<8x128xf32>
    %11 = arith.subf %5, %10 : vector<8x128xf32>
    %12 = math.cos %11 : vector<8x128xf32>
    %cst_7 = arith.constant 1.000000e-01 : f32
    %13 = vector.broadcast %cst_7 : f32 to vector<8x128xf32>
    %14 = arith.mulf %13, %12 : vector<8x128xf32>
    %15 = arith.subf %5, %14 : vector<8x128xf32>
    %16 = math.cos %15 : vector<8x128xf32>
    %cst_8 = arith.constant 1.000000e-01 : f32
    %17 = vector.broadcast %cst_8 : f32 to vector<8x128xf32>
    %18 = arith.mulf %17, %16 : vector<8x128xf32>
    %19 = arith.subf %5, %18 : vector<8x128xf32>
    %20 = math.cos %19 : vector<8x128xf32>
    %cst_9 = arith.constant 1.000000e-01 : f32
    %21 = vector.broadcast %cst_9 : f32 to vector<8x128xf32>
    %22 = arith.mulf %21, %20 : vector<8x128xf32>
    %23 = arith.subf %5, %22 : vector<8x128xf32>
    %24 = math.cos %23 : vector<8x128xf32>
    %cst_10 = arith.constant 1.000000e-01 : f32
    %25 = vector.broadcast %cst_10 : f32 to vector<8x128xf32>
    %26 = arith.mulf %25, %24 : vector<8x128xf32>
    %27 = arith.subf %5, %26 : vector<8x128xf32>
    %28 = math.cos %27 : vector<8x128xf32>
    %cst_11 = arith.constant 1.000000e-01 : f32
    %29 = vector.broadcast %cst_11 : f32 to vector<8x128xf32>
    %30 = arith.mulf %29, %28 : vector<8x128xf32>
    %31 = arith.subf %5, %30 : vector<8x128xf32>
    %32 = math.cos %31 : vector<8x128xf32>
    %cst_12 = arith.constant 1.000000e-01 : f32
    %33 = vector.broadcast %cst_12 : f32 to vector<8x128xf32>
    %34 = arith.mulf %33, %32 : vector<8x128xf32>
    %35 = arith.subf %5, %34 : vector<8x128xf32>
    %36 = math.cos %35 : vector<8x128xf32>
    %cst_13 = arith.constant 1.000000e-01 : f32
    %37 = vector.broadcast %cst_13 : f32 to vector<8x128xf32>
    %38 = arith.mulf %37, %36 : vector<8x128xf32>
    %39 = arith.subf %5, %38 : vector<8x128xf32>
    %40 = math.cos %39 : vector<8x128xf32>
    %cst_14 = arith.constant 1.000000e-01 : f32
    %41 = vector.broadcast %cst_14 : f32 to vector<8x128xf32>
    %42 = arith.mulf %41, %40 : vector<8x128xf32>
    %43 = arith.subf %5, %42 : vector<8x128xf32>
    %cst_15 = arith.constant 5.000000e-01 : f32
    %44 = vector.broadcast %cst_15 : f32 to vector<8x128xf32>
    %45 = arith.mulf %44, %43 : vector<8x128xf32>
    %46 = math.sin %45 : vector<8x128xf32>
    %47 = arith.mulf %46, %46 : vector<8x128xf32>
    %cst_16 = arith.constant 1.000000e-01 : f32
    %48 = vector.broadcast %cst_16 : f32 to vector<8x128xf32>
    %49 = arith.mulf %48, %47 : vector<8x128xf32>
    %c0_17 = arith.constant 0 : index
    %c0_18 = arith.constant 0 : index
    %50 = vector.load %arg4[%c0_17, %c0_18] : memref<128x128xf32, #tpu.memory_space<vmem>>, vector<128x128xf32>
    %cst_19 = arith.constant dense<0.000000e+00> : vector<8x128xf32>
    %51 = tpu.matmul %49, %50, %cst_19 {dimension_numbers = #tpu.dot_dimension_numbers<[1], [0], [0], [1], [0, 0, 1, 1], [], []>} : vector<8x128xf32>, vector<128x128xf32>, vector<8x128xf32> -> vector<8x128xf32>
    %c0_20 = arith.constant 0 : index
    %c0_21 = arith.constant 0 : index
    %52 = vector.load %arg5[%c0_20, %c0_21] : memref<1x128xf32, #tpu.memory_space<vmem>>, vector<1x128xf32>
    %53 = vector.broadcast %52 : vector<1x128xf32> to vector<8x128xf32>
    %54 = arith.addf %51, %53 : vector<8x128xf32>
    %c0_22 = arith.constant 0 : index
    %c0_23 = arith.constant 0 : index
    %55 = vector.load %arg6[%c0_22, %c0_23] : memref<8x128xf32, #tpu.memory_space<vmem>>, vector<8x128xf32>
    tpu.vector_store %arg6[%c0_22, %c0_23], %54 {strides = array<i32>} : memref<8x128xf32, #tpu.memory_space<vmem>>, vector<8x128xf32>,
    return
  }
  func.func @transform_0(%arg0: i32) -> (i32, i32) {
    %c0_i32 = arith.constant 0 : i32
    %c0_i32_0 = arith.constant 0 : i32
    return %arg0, %c0_i32 : i32, i32
  }
  func.func @transform_1(%arg0: i32) -> (i32, i32) {
    %c0_i32 = arith.constant 0 : i32
    %c0_i32_0 = arith.constant 0 : i32
    %c0_i32_1 = arith.constant 0 : i32
    return %c0_i32, %c0_i32_0 : i32, i32
  }
  func.func @transform_2(%arg0: i32) -> (i32, i32) {
    %c0_i32 = arith.constant 0 : i32
    %c0_i32_0 = arith.constant 0 : i32
    %c0_i32_1 = arith.constant 0 : i32
    return %c0_i32, %c0_i32_0 : i32, i32
  }
  func.func @transform_3(%arg0: i32) -> (i32, i32) {
    %c0_i32 = arith.constant 0 : i32
    %c0_i32_0 = arith.constant 0 : i32
    %c0_i32_1 = arith.constant 0 : i32
    return %c0_i32, %c0_i32_0 : i32, i32
  }
  func.func @transform_4(%arg0: i32) -> (i32, i32) {
    %c0_i32 = arith.constant 0 : i32
    %c0_i32_0 = arith.constant 0 : i32
    %c0_i32_1 = arith.constant 0 : i32
    return %c0_i32, %c0_i32_0 : i32, i32
  }
  func.func @transform_5(%arg0: i32) -> (i32, i32) {
    %c0_i32 = arith.constant 0 : i32
    %c0_i32_0 = arith.constant 0 : i32
    return %arg0, %c0_i32 : i32, i32
  }
}

</mosaic_0001>

<llo_original>
// kernel: tpu_custom_call.1
$region0: #{tpu_custom_call.1}
  #allocation0 [shape = 'u32[]', space=smem, size = 0x4, offset = 0x4, fixed_abs, tag = 'smem constant byte address 0x4 - core index']
  #allocation1 [shape = 'u32[144,128]{1,0:T(1,128)}', space=vmem, size = 0x12000, scoped, tag = 'internal scratch']
  %s0 = inlined_call_operand.hbm [shape: f32[8,128], index: 0, kind: input, shape index: {}]
  %s1 = inlined_call_operand.hbm [shape: f32[128,128], index: 1, kind: input, shape index: {}]
  %s2 = inlined_call_operand.vmem [shape: f32[1,128], index: 2, kind: input, shape index: {}]
  %s3 = inlined_call_operand.hbm [shape: f32[128,128], index: 3, kind: input, shape index: {}]
  %s4 = inlined_call_operand.vmem [shape: f32[1,128], index: 4, kind: input, shape index: {}]
  %s5 = inlined_call_operand.hbm [shape: f32[8,128], index: 5, kind: output, shape index: {}]
  %s6 = sld [smem:[#allocation0]]
  $region42: #{tpu_custom_call.1} parent=0
    _
  %s8 = ssub.s32 1, %s6
  %s9 = scalar_select 0, %s8, %s6
  $region1: #{tpu_custom_call.1} parent=0
    #allocation2 [shape = 'u8[4096]{0}', space=vmem, size = 0x1000, scoped, tag = 'input window, operand 0, single buffered']
    #allocation3 [shape = 's32[1]{0}', space=sflag, size = 0x4, scoped, tag = 'scoped memory for tpu_custom_call.1']
    #allocation4 [shape = 's32[1]{0}', space=sflag, size = 0x4, scoped, tag = 'scoped memory for tpu_custom_call.1']
    #allocation5 [shape = 'u8[65536]{0}', space=vmem, size = 0x10000, scoped, tag = 'input window, operand 1, single buffered']
    #allocation6 [shape = 's32[1]{0}', space=sflag, size = 0x4, scoped, tag = 'scoped memory for tpu_custom_call.1']
    #allocation7 [shape = 'u8[65536]{0}', space=vmem, size = 0x10000, scoped, tag = 'input window, operand 3, single buffered']
    #allocation8 [shape = 'u8[4096]{0}', space=vmem, size = 0x1000, scoped, tag = 'output window, operand 0, single buffered']
    %10 = vsyncpa [#allocation3], 0
    %11 = vsyncpa [#allocation6], 0
    %12 = vsyncpa [#allocation4], 0
    // Predicated region
    $region2: #{tpu_custom_call.1} parent=1 // pred_check
      _
    $region3: #{tpu_custom_call.1} parent=1 // pred_check_branch
      %14 = sbr.rel (0) target = $region5
    $region4: #{tpu_custom_call.1} parent=1 // pred_region
      %s16 = ssub.s32 128, 128
      %17 = vsyncadd [#allocation3], %s16
      %s19 = sshll.u32 [#allocation2], 4
      %s20 = int_to_ptr.vmem [resolvable:$true] %s19
      %22 = dma.hbm_to_vmem [thread:$0]  %s0, 128, %s20, [#allocation3]
    $region5: #{tpu_custom_call.1} parent=1 // pred_fallthru
      _
    // Predicated region
    $region6: #{tpu_custom_call.1} parent=1 // pred_check
      _
    $region7: #{tpu_custom_call.1} parent=1 // pred_check_branch
      %24 = sbr.rel (0) target = $region9
    $region8: #{tpu_custom_call.1} parent=1 // pred_region
      %s26 = ssub.s32 2048, 2048
      %27 = vsyncadd [#allocation6], %s26
      %s28 = sshll.u32 [#allocation5], 4
      %s29 = int_to_ptr.vmem [resolvable:$true] %s28
      %34 = dma.hbm_to_vmem [thread:$0]  %s1, 2048, %s29, [#allocation6], 128, 128, 8
    $region9: #{tpu_custom_call.1} parent=1 // pred_fallthru
      _
    // Predicated region
    $region10: #{tpu_custom_call.1} parent=1 // pred_check
      _
    $region11: #{tpu_custom_call.1} parent=1 // pred_check_branch
      %36 = sbr.rel (0) target = $region13
    $region12: #{tpu_custom_call.1} parent=1 // pred_region
      _
    $region13: #{tpu_custom_call.1} parent=1 // pred_fallthru
      _
    // Predicated region
    $region14: #{tpu_custom_call.1} parent=1 // pred_check
      _
    $region15: #{tpu_custom_call.1} parent=1 // pred_check_branch
      %38 = sbr.rel (0) target = $region17
    $region16: #{tpu_custom_call.1} parent=1 // pred_region
      %s40 = ssub.s32 2048, 2048
      %41 = vsyncadd [#allocation6], %s40
      %s42 = sshll.u32 [#allocation7], 4
      %s43 = int_to_ptr.vmem [resolvable:$true] %s42
      %48 = dma.hbm_to_vmem [thread:$0]  %s3, 2048, %s43, [#allocation6], 128, 128, 8
    $region17: #{tpu_custom_call.1} parent=1 // pred_fallthru
      _
    // Predicated region
    $region18: #{tpu_custom_call.1} parent=1 // pred_check
      _
    $region19: #{tpu_custom_call.1} parent=1 // pred_check_branch
      %50 = sbr.rel (0) target = $region21
    $region20: #{tpu_custom_call.1} parent=1 // pred_region
      _
    $region21: #{tpu_custom_call.1} parent=1 // pred_fallthru
      _
    // Predicated region
    $region22: #{tpu_custom_call.1} parent=1 // pred_check
      _
    $region23: #{tpu_custom_call.1} parent=1 // pred_check_branch
      %52 = sbr.rel (0) target = $region25
    $region24: #{tpu_custom_call.1} parent=1 // pred_region
      %53 = dma.done [#allocation3], 128
    $region25: #{tpu_custom_call.1} parent=1 // pred_fallthru
      _
    // Predicated region
    $region26: #{tpu_custom_call.1} parent=1 // pred_check
      _
    $region27: #{tpu_custom_call.1} parent=1 // pred_check_branch
      %55 = sbr.rel (0) target = $region29
    $region28: #{tpu_custom_call.1} parent=1 // pred_region
      %56 = dma.done [#allocation6], 2048
    $region29: #{tpu_custom_call.1} parent=1 // pred_fallthru
      _
    // Predicated region
    $region30: #{tpu_custom_call.1} parent=1 // pred_check
      _
    $region31: #{tpu_custom_call.1} parent=1 // pred_check_branch
      %58 = sbr.rel (0) target = $region33
    $region32: #{tpu_custom_call.1} parent=1 // pred_region
      %59 = dma.done [#allocation6], 2048
    $region33: #{tpu_custom_call.1} parent=1 // pred_fallthru
      _
    %v60 = vld [vmem:[#allocation2] sm:$0xff]
    %v61 = vld [vmem:[#allocation5] sm:$0xff]
    %v62 = vld [vmem:[#allocation5 + $0x8] sm:$0xff]
    %v63 = vld [vmem:[#allocation5 + $0x10] sm:$0xff]
    %v64 = vld [vmem:[#allocation5 + $0x18] sm:$0xff]
    %v65 = vld [vmem:[#allocation5 + $0x20] sm:$0xff]
    %v66 = vld [vmem:[#allocation5 + $0x28] sm:$0xff]
    %v67 = vld [vmem:[#allocation5 + $0x30] sm:$0xff]
    %v68 = vld [vmem:[#allocation5 + $0x38] sm:$0xff]
    %v69 = vld [vmem:[#allocation5 + $0x40] sm:$0xff]
    %v70 = vld [vmem:[#allocation5 + $0x48] sm:$0xff]
    %v71 = vld [vmem:[#allocation5 + $0x50] sm:$0xff]
    %v72 = vld [vmem:[#allocation5 + $0x58] sm:$0xff]
    %v73 = vld [vmem:[#allocation5 + $0x60] sm:$0xff]
    %v74 = vld [vmem:[#allocation5 + $0x68] sm:$0xff]
    %v75 = vld [vmem:[#allocation5 + $0x70] sm:$0xff]
    %v76 = vld [vmem:[#allocation5 + $0x78] sm:$0xff]
    %v77 = vld [vmem:[%s2] sm:$0x1]
    %v79 = vlaneseq
    %v80 = vshrl.u32 %v79, 7
    %v81 = vsub.s32 0, %v80
    %v82 = vrot.slane %v77, %v81
    %84 = vmatprep.subr.mxu0 0.0
    %85 = vmatpush1.msra.mxu0 %v61
    %86 = vmatprep.subr.mxu0 0.0
    %87 = vmatpush1.msra.mxu0 %v62
    %88 = vmatprep.subr.mxu0 0.0
    %89 = vmatpush1.msra.mxu0 %v63
    %90 = vmatprep.subr.mxu0 0.0
    %91 = vmatpush1.msra.mxu0 %v64
    %92 = vmatprep.subr.mxu0 0.0
    %93 = vmatpush1.msra.mxu0 %v65
    %94 = vmatprep.subr.mxu0 0.0
    %95 = vmatpush1.msra.mxu0 %v66
    %96 = vmatprep.subr.mxu0 0.0
    %97 = vmatpush1.msra.mxu0 %v67
    %98 = vmatprep.subr.mxu0 0.0
    %99 = vmatpush1.msra.mxu0 %v68
    %100 = vmatprep.subr.mxu0 0.0
    %101 = vmatpush1.msra.mxu0 %v69
    %102 = vmatprep.subr.mxu0 0.0
    %103 = vmatpush1.msra.mxu0 %v70
    %104 = vmatprep.subr.mxu0 0.0
    %105 = vmatpush1.msra.mxu0 %v71
    %106 = vmatprep.subr.mxu0 0.0
    %107 = vmatpush1.msra.mxu0 %v72
    %108 = vmatprep.subr.mxu0 0.0
    %109 = vmatpush1.msra.mxu0 %v73
    %110 = vmatprep.subr.mxu0 0.0
    %111 = vmatpush1.msra.mxu0 %v74
    %112 = vmatprep.subr.mxu0 0.0
    %113 = vmatpush1.msra.mxu0 %v75
    %114 = vmatprep.subr.mxu0 0.0
    %115 = vmatpush1.msra.mxu0 %v76
    %116 = vmatprep.subr.mxu0 0.0
    %117 = vmatpush1.msra.mxu0 0.0
    %118 = vmatprep.subr.mxu0 0.0
    %119 = vmatpush1.msra.mxu0 0.0
    %120 = vmatprep.subr.mxu0 0.0
    %121 = vmatpush1.msra.mxu0 0.0
    %122 = vmatprep.subr.mxu0 0.0
    %123 = vmatpush1.msra.mxu0 0.0
    %124 = vmatprep.subr.mxu0 0.0
    %125 = vmatpush1.msra.mxu0 0.0
    %126 = vmatprep.subr.mxu0 0.0
    %127 = vmatpush1.msra.mxu0 0.0
    %128 = vmatprep.subr.mxu0 0.0
    %129 = vmatpush1.msra.mxu0 0.0
    %130 = vmatprep.subr.mxu0 0.0
    %131 = vmatpush1.msra.mxu0 0.0
    %132 = vmatprep.subr.mxu0 0.0
    %133 = vmatpush1.msra.mxu0 0.0
    %134 = vmatprep.subr.mxu0 0.0
    %135 = vmatpush1.msra.mxu0 0.0
    %136 = vmatprep.subr.mxu0 0.0
    %137 = vmatpush1.msra.mxu0 0.0
    %138 = vmatprep.subr.mxu0 0.0
    %139 = vmatpush1.msra.mxu0 0.0
    %140 = vmatprep.subr.mxu0 0.0
    %141 = vmatpush1.msra.mxu0 0.0
    %142 = vmatprep.subr.mxu0 0.0
    %143 = vmatpush1.msra.mxu0 0.0
    %144 = vmatprep.subr.mxu0 0.0
    %145 = vmatpush1.msra.mxu0 0.0
    %146 = vmatprep.subr.mxu0 0.0
    %147 = vmatpush1.msra.mxu0 0.0
    %148 = vmatprep.mubr.f32.mxu0 0.0
    %149 = vmatmul.mubr.f32.gmra.mrb[0].mxu0 %v60
    %v150 = vpop.f32.mrb[0].mxu0
    %v151 = vadd.f32 %v82, %v150
    %v152 = vpop.f32.mrb[0].mxu0
    %153 = vdwg.mxu0
    %v154 = vsub.f32 %v151, 0.1
    %v155 = vand.u32 2147483647, %v154
    %vm156 = vcmp.le.f32.partialorder %v155, 0.7853982
    %vm157 = vcmp.lt.s32.totalorder %v154, 0
    %v158 = vand.u32 %v154, 2139095040
    %v159 = vshrl.u32 %v158, 23
    %v160 = vsub.s32 %v159, 127
    %v161 = vand.u32 2147483647, %v154
    %v162 = vand.u32 %v161, 8388607
    %v163 = vor.u32 %v162, 8388608
    %v164 = vsub.s32 0, %v163
    %v165 = vadd.s32 %v160, 1
    %vm166 = vcmp.gt.s32.totalorder %v165, 0
    %v167 = vsel %vm166, %v165, 0
    %v168 = vshrl.u32 %v167, 5
    %v169 = vand.u32 %v167, 31
    %v170 = vsub.s32 32, %v169
    %v171 = vshrl.u32 683565275, %v170
    %v172 = vshll.u32 683565275, %v169
    %v173 = vshrl.u32 2475754826, %v170
    %v174 = vor.u32 %v172, %v173
    %v175 = vshll.u32 2475754826, %v169
    %v176 = vshrl.u32 2131351028, %v170
    %v177 = vor.u32 %v175, %v176
    %v178 = vshll.u32 2131351028, %v169
    %v179 = vshrl.u32 2102212464, %v170
    %v180 = vor.u32 %v178, %v179
    %v181 = vshll.u32 2102212464, %v169
    %v182 = vshrl.u32 920167782, %v170
    %v183 = vor.u32 %v181, %v182
    %v184 = vshll.u32 920167782, %v169
    %v185 = vshrl.u32 1326507024, %v170
    %v186 = vor.u32 %v184, %v185
    %vm187 = vcmp.lt.s32.totalorder %v168, 1
    %vm188 = vcmp.lt.s32.totalorder %v168, 2
    %vm189 = vcmp.lt.s32.totalorder %v168, 3
    %vm190 = vcmp.lt.s32.totalorder %v168, 4
    %v191 = vsel %vm187, %v171, %v174
    %v192 = vsel %vm190, %v180, 2102212464
    %v193 = vsel %vm189, %v177, %v192
    %v194 = vsel %vm188, %v191, %v193
    %v195 = vsel %vm187, %v174, %v177
    %v196 = vsel %vm190, %v183, 920167782
    %v197 = vsel %vm189, %v180, %v196
    %v198 = vsel %vm188, %v195, %v197
    %v199 = vsel %vm187, %v177, %v180
    %v200 = vsel %vm190, %v186, 1326507024
    %v201 = vsel %vm189, %v183, %v200
    %v202 = vsel %vm188, %v199, %v201
    %v203 = vshll.u32 %v163, 8
    %v204 = vmul.u32.u64.compose %v203, %v202
    %v205 = vextract.low.u32 %v204
    %v206 = vextract.high.u32 %v204
    %v207 = vmul.u32.u64.compose %v203, %v198
    %v208 = vextract.low.u32 %v207
    %v209 = vextract.high.u32 %v207
    %v210 = vmul.u32 %v203, %v194
    %v211 = vadd.s32 %v206, %v208
    %vm212 = vc.u32 %v206, %v208
    %v213 = vadd.s32 %v209, 1
    %v214 = vsel %vm212, %v213, %v209
    %v215 = vadd.s32 %v210, %v214
    %v216 = vadd.s32 %v215, 536870912
    %v217 = vshrl.u32 %v216, 30
    %v218 = vshll.u32 %v217, 30
    %v219 = vsub.s32 %v215, %v218
    %vm220 = vcmp.lt.s32.totalorder %v219, 0
    %v221 = vsub.s32 0, %v219
    %v222 = vsel %vm220, %v221, %v219
    %v223 = vclz %v222
    %v224 = vsub.s32 %v223, 2
    %vm225 = vcmp.gt.s32.totalorder 0, %v224
    %v226 = vsel %vm225, 0, %v224
    %v227 = vsub.s32 32, %v226
    %v228 = vshll.u32 %v219, %v226
    %v229 = vshrl.u32 %v211, %v227
    %v230 = vor.u32 %v228, %v229
    %v231 = vsub.s32 4294967266, %v226
    %v232 = vadd.s32 %v231, 127
    %v233 = vshll.u32 %v232, 23
    %v234 = vor.u32 4788187, %v233
    %v235 = vand.u32 2147483647, %v234
    %v237 = vcvt.s32.f32 %v230
    %v238 = vmul.f32 %v237, %v235
    %v239 = vxor.u32 %v238, 2147483648
    %v240 = vsel %vm157, %v239, %v238
    %v241 = vsub.s32 4, %v217
    %v242 = vsel %vm157, %v241, %v217
    %v243 = vsel %vm156, %v154, %v240
    %v244 = vsel %vm156, 0, %v242
    %v245 = vcosq.f32.pop %v243
    %v246 = vsinq.f32.pop %v243
    %vm247 = vweird.f32 %v154
    %v248 = vand.u32 %v244, 3
    %vm249 = vcmp.lt.s32.totalorder %v248, 2
    %vm250 = vcmp.eq.s32.totalorder %v248, 0
    %v251 = vxor.u32 %v246, 2147483648
    %v252 = vsel %vm250, %v245, %v251
    %vm253 = vcmp.eq.s32.totalorder %v248, 2
    %v254 = vxor.u32 %v245, 2147483648
    %v255 = vsel %vm253, %v254, %v246
    %v256 = vsel %vm249, %v252, %v255
    %v257 = vsel %vm247, nan, %v256
    %v258 = vmul.f32 %v257, 0.1
    %v259 = vsub.f32 %v151, %v258
    %v260 = vand.u32 2147483647, %v259
    %vm261 = vcmp.le.f32.partialorder %v260, 0.7853982
    %vm262 = vcmp.lt.s32.totalorder %v259, 0
    %v263 = vand.u32 %v259, 2139095040
    %v264 = vshrl.u32 %v263, 23
    %v265 = vsub.s32 %v264, 127
    %v266 = vand.u32 2147483647, %v259
    %v267 = vand.u32 %v266, 8388607
    %v268 = vor.u32 %v267, 8388608
    %v269 = vsub.s32 0, %v268
    %v270 = vadd.s32 %v265, 1
    %vm271 = vcmp.gt.s32.totalorder %v270, 0
    %v272 = vsel %vm271, %v270, 0
    %v273 = vshrl.u32 %v272, 5
    %v274 = vand.u32 %v272, 31
    %v275 = vsub.s32 32, %v274
    %v276 = vshrl.u32 683565275, %v275
    %v277 = vshll.u32 683565275, %v274
    %v278 = vshrl.u32 2475754826, %v275
    %v279 = vor.u32 %v277, %v278
    %v280 = vshll.u32 2475754826, %v274
    %v281 = vshrl.u32 2131351028, %v275
    %v282 = vor.u32 %v280, %v281
    %v283 = vshll.u32 2131351028, %v274
    %v284 = vshrl.u32 2102212464, %v275
    %v285 = vor.u32 %v283, %v284
    %v286 = vshll.u32 2102212464, %v274
    %v287 = vshrl.u32 920167782, %v275
    %v288 = vor.u32 %v286, %v287
    %v289 = vshll.u32 920167782, %v274
    %v290 = vshrl.u32 1326507024, %v275
    %v291 = vor.u32 %v289, %v290
    %vm292 = vcmp.lt.s32.totalorder %v273, 1
    %vm293 = vcmp.lt.s32.totalorder %v273, 2
    %vm294 = vcmp.lt.s32.totalorder %v273, 3
    %vm295 = vcmp.lt.s32.totalorder %v273, 4
    %v296 = vsel %vm292, %v276, %v279
    %v297 = vsel %vm295, %v285, 2102212464
    %v298 = vsel %vm294, %v282, %v297
    %v299 = vsel %vm293, %v296, %v298
    %v300 = vsel %vm292, %v279, %v282
    %v301 = vsel %vm295, %v288, 920167782
    %v302 = vsel %vm294, %v285, %v301
    %v303 = vsel %vm293, %v300, %v302
    %v304 = vsel %vm292, %v282, %v285
    %v305 = vsel %vm295, %v291, 1326507024
    %v306 = vsel %vm294, %v288, %v305
    %v307 = vsel %vm293, %v304, %v306
    %v308 = vshll.u32 %v268, 8
    %v309 = vmul.u32.u64.compose %v308, %v307
    %v310 = vextract.low.u32 %v309
    %v311 = vextract.high.u32 %v309
    %v312 = vmul.u32.u64.compose %v308, %v303
    %v313 = vextract.low.u32 %v312
    %v314 = vextract.high.u32 %v312
    %v315 = vmul.u32 %v308, %v299
    %v316 = vadd.s32 %v311, %v313
    %vm317 = vc.u32 %v311, %v313
    %v318 = vadd.s32 %v314, 1
    %v319 = vsel %vm317, %v318, %v314
    %v320 = vadd.s32 %v315, %v319
    %v321 = vadd.s32 %v320, 536870912
    %v322 = vshrl.u32 %v321, 30
    %v323 = vshll.u32 %v322, 30
    %v324 = vsub.s32 %v320, %v323
    %vm325 = vcmp.lt.s32.totalorder %v324, 0
    %v326 = vsub.s32 0, %v324
    %v327 = vsel %vm325, %v326, %v324
    %v328 = vclz %v327
    %v329 = vsub.s32 %v328, 2
    %vm330 = vcmp.gt.s32.totalorder 0, %v329
    %v331 = vsel %vm330, 0, %v329
    %v332 = vsub.s32 32, %v331
    %v333 = vshll.u32 %v324, %v331
    %v334 = vshrl.u32 %v316, %v332
    %v335 = vor.u32 %v333, %v334
    %v336 = vsub.s32 4294967266, %v331
    %v337 = vadd.s32 %v336, 127
    %v338 = vshll.u32 %v337, 23
    %v339 = vor.u32 4788187, %v338
    %v340 = vand.u32 2147483647, %v339
    %v342 = vcvt.s32.f32 %v335
    %v343 = vmul.f32 %v342, %v340
    %v344 = vxor.u32 %v343, 2147483648
    %v345 = vsel %vm262, %v344, %v343
    %v346 = vsub.s32 4, %v322
    %v347 = vsel %vm262, %v346, %v322
    %v348 = vsel %vm261, %v259, %v345
    %v349 = vsel %vm261, 0, %v347
    %v350 = vcosq.f32.pop %v348
    %v351 = vsinq.f32.pop %v348
    %vm352 = vweird.f32 %v259
    %v353 = vand.u32 %v349, 3
    %vm354 = vcmp.lt.s32.totalorder %v353, 2
    %vm355 = vcmp.eq.s32.totalorder %v353, 0
    %v356 = vxor.u32 %v351, 2147483648
    %v357 = vsel %vm355, %v350, %v356
    %vm358 = vcmp.eq.s32.totalorder %v353, 2
    %v359 = vxor.u32 %v350, 2147483648
    %v360 = vsel %vm358, %v359, %v351
    %v361 = vsel %vm354, %v357, %v360
    %v362 = vsel %vm352, nan, %v361
    %v363 = vmul.f32 %v362, 0.1
    %v364 = vsub.f32 %v151, %v363
    %v365 = vand.u32 2147483647, %v364
    %vm366 = vcmp.le.f32.partialorder %v365, 0.7853982
    %vm367 = vcmp.lt.s32.totalorder %v364, 0
    %v368 = vand.u32 %v364, 2139095040
    %v369 = vshrl.u32 %v368, 23
    %v370 = vsub.s32 %v369, 127
    %v371 = vand.u32 2147483647, %v364
    %v372 = vand.u32 %v371, 8388607
    %v373 = vor.u32 %v372, 8388608
    %v374 = vsub.s32 0, %v373
    %v375 = vadd.s32 %v370, 1
    %vm376 = vcmp.gt.s32.totalorder %v375, 0
    %v377 = vsel %vm376, %v375, 0
    %v378 = vshrl.u32 %v377, 5
    %v379 = vand.u32 %v377, 31
    %v380 = vsub.s32 32, %v379
    %v381 = vshrl.u32 683565275, %v380
    %v382 = vshll.u32 683565275, %v379
    %v383 = vshrl.u32 2475754826, %v380
    %v384 = vor.u32 %v382, %v383
    %v385 = vshll.u32 2475754826, %v379
    %v386 = vshrl.u32 2131351028, %v380
    %v387 = vor.u32 %v385, %v386
    %v388 = vshll.u32 2131351028, %v379
    %v389 = vshrl.u32 2102212464, %v380
    %v390 = vor.u32 %v388, %v389
    %v391 = vshll.u32 2102212464, %v379
    %v392 = vshrl.u32 920167782, %v380
    %v393 = vor.u32 %v391, %v392
    %v394 = vshll.u32 920167782, %v379
    %v395 = vshrl.u32 1326507024, %v380
    %v396 = vor.u32 %v394, %v395
    %vm397 = vcmp.lt.s32.totalorder %v378, 1
    %vm398 = vcmp.lt.s32.totalorder %v378, 2
    %vm399 = vcmp.lt.s32.totalorder %v378, 3
    %vm400 = vcmp.lt.s32.totalorder %v378, 4
    %v401 = vsel %vm397, %v381, %v384
    %v402 = vsel %vm400, %v390, 2102212464
    %v403 = vsel %vm399, %v387, %v402
    %v404 = vsel %vm398, %v401, %v403
    %v405 = vsel %vm397, %v384, %v387
    %v406 = vsel %vm400, %v393, 920167782
    %v407 = vsel %vm399, %v390, %v406
    %v408 = vsel %vm398, %v405, %v407
    %v409 = vsel %vm397, %v387, %v390
    %v410 = vsel %vm400, %v396, 1326507024
    %v411 = vsel %vm399, %v393, %v410
    %v412 = vsel %vm398, %v409, %v411
    %v413 = vshll.u32 %v373, 8
    %v414 = vmul.u32.u64.compose %v413, %v412
    %v415 = vextract.low.u32 %v414
    %v416 = vextract.high.u32 %v414
    %v417 = vmul.u32.u64.compose %v413, %v408
    %v418 = vextract.low.u32 %v417
    %v419 = vextract.high.u32 %v417
    %v420 = vmul.u32 %v413, %v404
    %v421 = vadd.s32 %v416, %v418
    %vm422 = vc.u32 %v416, %v418
    %v423 = vadd.s32 %v419, 1
    %v424 = vsel %vm422, %v423, %v419
    %v425 = vadd.s32 %v420, %v424
    %v426 = vadd.s32 %v425, 536870912
    %v427 = vshrl.u32 %v426, 30
    %v428 = vshll.u32 %v427, 30
    %v429 = vsub.s32 %v425, %v428
    %vm430 = vcmp.lt.s32.totalorder %v429, 0
    %v431 = vsub.s32 0, %v429
    %v432 = vsel %vm430, %v431, %v429
    %v433 = vclz %v432
    %v434 = vsub.s32 %v433, 2
    %vm435 = vcmp.gt.s32.totalorder 0, %v434
    %v436 = vsel %vm435, 0, %v434
    %v437 = vsub.s32 32, %v436
    %v438 = vshll.u32 %v429, %v436
    %v439 = vshrl.u32 %v421, %v437
    %v440 = vor.u32 %v438, %v439
    %v441 = vsub.s32 4294967266, %v436
    %v442 = vadd.s32 %v441, 127
    %v443 = vshll.u32 %v442, 23
    %v444 = vor.u32 4788187, %v443
    %v445 = vand.u32 2147483647, %v444
    %v447 = vcvt.s32.f32 %v440
    %v448 = vmul.f32 %v447, %v445
    %v449 = vxor.u32 %v448, 2147483648
    %v450 = vsel %vm367, %v449, %v448
    %v451 = vsub.s32 4, %v427
    %v452 = vsel %vm367, %v451, %v427
    %v453 = vsel %vm366, %v364, %v450
    %v454 = vsel %vm366, 0, %v452
    %v455 = vcosq.f32.pop %v453
    %v456 = vsinq.f32.pop %v453
    %vm457 = vweird.f32 %v364
    %v458 = vand.u32 %v454, 3
    %vm459 = vcmp.lt.s32.totalorder %v458, 2
    %vm460 = vcmp.eq.s32.totalorder %v458, 0
    %v461 = vxor.u32 %v456, 2147483648
    %v462 = vsel %vm460, %v455, %v461
    %vm463 = vcmp.eq.s32.totalorder %v458, 2
    %v464 = vxor.u32 %v455, 2147483648
    %v465 = vsel %vm463, %v464, %v456
    %v466 = vsel %vm459, %v462, %v465
    %v467 = vsel %vm457, nan, %v466
    %v468 = vmul.f32 %v467, 0.1
    %v469 = vsub.f32 %v151, %v468
    %v470 = vand.u32 2147483647, %v469
    %vm471 = vcmp.le.f32.partialorder %v470, 0.7853982
    %vm472 = vcmp.lt.s32.totalorder %v469, 0
    %v473 = vand.u32 %v469, 2139095040
    %v474 = vshrl.u32 %v473, 23
    %v475 = vsub.s32 %v474, 127
    %v476 = vand.u32 2147483647, %v469
    %v477 = vand.u32 %v476, 8388607
    %v478 = vor.u32 %v477, 8388608
    %v479 = vsub.s32 0, %v478
    %v480 = vadd.s32 %v475, 1
    %vm481 = vcmp.gt.s32.totalorder %v480, 0
    %v482 = vsel %vm481, %v480, 0
    %v483 = vshrl.u32 %v482, 5
    %v484 = vand.u32 %v482, 31
    %v485 = vsub.s32 32, %v484
    %v486 = vshrl.u32 683565275, %v485
    %v487 = vshll.u32 683565275, %v484
    %v488 = vshrl.u32 2475754826, %v485
    %v489 = vor.u32 %v487, %v488
    %v490 = vshll.u32 2475754826, %v484
    %v491 = vshrl.u32 2131351028, %v485
    %v492 = vor.u32 %v490, %v491
    %v493 = vshll.u32 2131351028, %v484
    %v494 = vshrl.u32 2102212464, %v485
    %v495 = vor.u32 %v493, %v494
    %v496 = vshll.u32 2102212464, %v484
    %v497 = vshrl.u32 920167782, %v485
    %v498 = vor.u32 %v496, %v497
    %v499 = vshll.u32 920167782, %v484
    %v500 = vshrl.u32 1326507024, %v485
    %v501 = vor.u32 %v499, %v500
    %vm502 = vcmp.lt.s32.totalorder %v483, 1
    %vm503 = vcmp.lt.s32.totalorder %v483, 2
    %vm504 = vcmp.lt.s32.totalorder %v483, 3
    %vm505 = vcmp.lt.s32.totalorder %v483, 4
    %v506 = vsel %vm502, %v486, %v489
    %v507 = vsel %vm505, %v495, 2102212464
    %v508 = vsel %vm504, %v492, %v507
    %v509 = vsel %vm503, %v506, %v508
    %v510 = vsel %vm502, %v489, %v492
    %v511 = vsel %vm505, %v498, 920167782
    %v512 = vsel %vm504, %v495, %v511
    %v513 = vsel %vm503, %v510, %v512
    %v514 = vsel %vm502, %v492, %v495
    %v515 = vsel %vm505, %v501, 1326507024
    %v516 = vsel %vm504, %v498, %v515
    %v517 = vsel %vm503, %v514, %v516
    %v518 = vshll.u32 %v478, 8
    %v519 = vmul.u32.u64.compose %v518, %v517
    %v520 = vextract.low.u32 %v519
    %v521 = vextract.high.u32 %v519
    %v522 = vmul.u32.u64.compose %v518, %v513
    %v523 = vextract.low.u32 %v522
    %v524 = vextract.high.u32 %v522
    %v525 = vmul.u32 %v518, %v509
    %v526 = vadd.s32 %v521, %v523
    %vm527 = vc.u32 %v521, %v523
    %v528 = vadd.s32 %v524, 1
    %v529 = vsel %vm527, %v528, %v524
    %v530 = vadd.s32 %v525, %v529
    %v531 = vadd.s32 %v530, 536870912
    %v532 = vshrl.u32 %v531, 30
    %v533 = vshll.u32 %v532, 30
    %v534 = vsub.s32 %v530, %v533
    %vm535 = vcmp.lt.s32.totalorder %v534, 0
    %v536 = vsub.s32 0, %v534
    %v537 = vsel %vm535, %v536, %v534
    %v538 = vclz %v537
    %v539 = vsub.s32 %v538, 2
    %vm540 = vcmp.gt.s32.totalorder 0, %v539
    %v541 = vsel %vm540, 0, %v539
    %v542 = vsub.s32 32, %v541
    %v543 = vshll.u32 %v534, %v541
    %v544 = vshrl.u32 %v526, %v542
    %v545 = vor.u32 %v543, %v544
    %v546 = vsub.s32 4294967266, %v541
    %v547 = vadd.s32 %v546, 127
    %v548 = vshll.u32 %v547, 23
    %v549 = vor.u32 4788187, %v548
    %v550 = vand.u32 2147483647, %v549
    %v552 = vcvt.s32.f32 %v545
    %v553 = vmul.f32 %v552, %v550
    %v554 = vxor.u32 %v553, 2147483648
    %v555 = vsel %vm472, %v554, %v553
    %v556 = vsub.s32 4, %v532
    %v557 = vsel %vm472, %v556, %v532
    %v558 = vsel %vm471, %v469, %v555
    %v559 = vsel %vm471, 0, %v557
    %v560 = vcosq.f32.pop %v558
    %v561 = vsinq.f32.pop %v558
    %vm562 = vweird.f32 %v469
    %v563 = vand.u32 %v559, 3
    %vm564 = vcmp.lt.s32.totalorder %v563, 2
    %vm565 = vcmp.eq.s32.totalorder %v563, 0
    %v566 = vxor.u32 %v561, 2147483648
    %v567 = vsel %vm565, %v560, %v566
    %vm568 = vcmp.eq.s32.totalorder %v563, 2
    %v569 = vxor.u32 %v560, 2147483648
    %v570 = vsel %vm568, %v569, %v561
    %v571 = vsel %vm564, %v567, %v570
    %v572 = vsel %vm562, nan, %v571
    %v573 = vmul.f32 %v572, 0.1
    %v574 = vsub.f32 %v151, %v573
    %v575 = vand.u32 2147483647, %v574
    %vm576 = vcmp.le.f32.partialorder %v575, 0.7853982
    %vm577 = vcmp.lt.s32.totalorder %v574, 0
    %v578 = vand.u32 %v574, 2139095040
    %v579 = vshrl.u32 %v578, 23
    %v580 = vsub.s32 %v579, 127
    %v581 = vand.u32 2147483647, %v574
    %v582 = vand.u32 %v581, 8388607
    %v583 = vor.u32 %v582, 8388608
    %v584 = vsub.s32 0, %v583
    %v585 = vadd.s32 %v580, 1
    %vm586 = vcmp.gt.s32.totalorder %v585, 0
    %v587 = vsel %vm586, %v585, 0
    %v588 = vshrl.u32 %v587, 5
    %v589 = vand.u32 %v587, 31
    %v590 = vsub.s32 32, %v589
    %v591 = vshrl.u32 683565275, %v590
    %v592 = vshll.u32 683565275, %v589
    %v593 = vshrl.u32 2475754826, %v590
    %v594 = vor.u32 %v592, %v593
    %v595 = vshll.u32 2475754826, %v589
    %v596 = vshrl.u32 2131351028, %v590
    %v597 = vor.u32 %v595, %v596
    %v598 = vshll.u32 2131351028, %v589
    %v599 = vshrl.u32 2102212464, %v590
    %v600 = vor.u32 %v598, %v599
    %v601 = vshll.u32 2102212464, %v589
    %v602 = vshrl.u32 920167782, %v590
    %v603 = vor.u32 %v601, %v602
    %v604 = vshll.u32 920167782, %v589
    %v605 = vshrl.u32 1326507024, %v590
    %v606 = vor.u32 %v604, %v605
    %vm607 = vcmp.lt.s32.totalorder %v588, 1
    %vm608 = vcmp.lt.s32.totalorder %v588, 2
    %vm609 = vcmp.lt.s32.totalorder %v588, 3
    %vm610 = vcmp.lt.s32.totalorder %v588, 4
    %v611 = vsel %vm607, %v591, %v594
    %v612 = vsel %vm610, %v600, 2102212464
    %v613 = vsel %vm609, %v597, %v612
    %v614 = vsel %vm608, %v611, %v613
    %v615 = vsel %vm607, %v594, %v597
    %v616 = vsel %vm610, %v603, 920167782
    %v617 = vsel %vm609, %v600, %v616
    %v618 = vsel %vm608, %v615, %v617
    %v619 = vsel %vm607, %v597, %v600
    %v620 = vsel %vm610, %v606, 1326507024
    %v621 = vsel %vm609, %v603, %v620
    %v622 = vsel %vm608, %v619, %v621
    %v623 = vshll.u32 %v583, 8
    %v624 = vmul.u32.u64.compose %v623, %v622
    %v625 = vextract.low.u32 %v624
    %v626 = vextract.high.u32 %v624
    %v627 = vmul.u32.u64.compose %v623, %v618
    %v628 = vextract.low.u32 %v627
    %v629 = vextract.high.u32 %v627
    %v630 = vmul.u32 %v623, %v614
    %v631 = vadd.s32 %v626, %v628
    %vm632 = vc.u32 %v626, %v628
    %v633 = vadd.s32 %v629, 1
    %v634 = vsel %vm632, %v633, %v629
    %v635 = vadd.s32 %v630, %v634
    %v636 = vadd.s32 %v635, 536870912
    %v637 = vshrl.u32 %v636, 30
    %v638 = vshll.u32 %v637, 30
    %v639 = vsub.s32 %v635, %v638
    %vm640 = vcmp.lt.s32.totalorder %v639, 0
    %v641 = vsub.s32 0, %v639
    %v642 = vsel %vm640, %v641, %v639
    %v643 = vclz %v642
    %v644 = vsub.s32 %v643, 2
    %vm645 = vcmp.gt.s32.totalorder 0, %v644
    %v646 = vsel %vm645, 0, %v644
    %v647 = vsub.s32 32, %v646
    %v648 = vshll.u32 %v639, %v646
    %v649 = vshrl.u32 %v631, %v647
    %v650 = vor.u32 %v648, %v649
    %v651 = vsub.s32 4294967266, %v646
    %v652 = vadd.s32 %v651, 127
    %v653 = vshll.u32 %v652, 23
    %v654 = vor.u32 4788187, %v653
    %v655 = vand.u32 2147483647, %v654
    %v657 = vcvt.s32.f32 %v650
    %v658 = vmul.f32 %v657, %v655
    %v659 = vxor.u32 %v658, 2147483648
    %v660 = vsel %vm577, %v659, %v658
    %v661 = vsub.s32 4, %v637
    %v662 = vsel %vm577, %v661, %v637
    %v663 = vsel %vm576, %v574, %v660
    %v664 = vsel %vm576, 0, %v662
    %v665 = vcosq.f32.pop %v663
    %v666 = vsinq.f32.pop %v663
    %vm667 = vweird.f32 %v574
    %v668 = vand.u32 %v664, 3
    %vm669 = vcmp.lt.s32.totalorder %v668, 2
    %vm670 = vcmp.eq.s32.totalorder %v668, 0
    %v671 = vxor.u32 %v666, 2147483648
    %v672 = vsel %vm670, %v665, %v671
    %vm673 = vcmp.eq.s32.totalorder %v668, 2
    %v674 = vxor.u32 %v665, 2147483648
    %v675 = vsel %vm673, %v674, %v666
    %v676 = vsel %vm669, %v672, %v675
    %v677 = vsel %vm667, nan, %v676
    %v678 = vmul.f32 %v677, 0.1
    %v679 = vsub.f32 %v151, %v678
    %v680 = vand.u32 2147483647, %v679
    %vm681 = vcmp.le.f32.partialorder %v680, 0.7853982
    %vm682 = vcmp.lt.s32.totalorder %v679, 0
    %v683 = vand.u32 %v679, 2139095040
    %v684 = vshrl.u32 %v683, 23
    %v685 = vsub.s32 %v684, 127
    %v686 = vand.u32 2147483647, %v679
    %v687 = vand.u32 %v686, 8388607
    %v688 = vor.u32 %v687, 8388608
    %v689 = vsub.s32 0, %v688
    %v690 = vadd.s32 %v685, 1
    %vm691 = vcmp.gt.s32.totalorder %v690, 0
    %v692 = vsel %vm691, %v690, 0
    %v693 = vshrl.u32 %v692, 5
    %v694 = vand.u32 %v692, 31
    %v695 = vsub.s32 32, %v694
    %v696 = vshrl.u32 683565275, %v695
    %v697 = vshll.u32 683565275, %v694
    %v698 = vshrl.u32 2475754826, %v695
    %v699 = vor.u32 %v697, %v698
    %v700 = vshll.u32 2475754826, %v694
    %v701 = vshrl.u32 2131351028, %v695
    %v702 = vor.u32 %v700, %v701
    %v703 = vshll.u32 2131351028, %v694
    %v704 = vshrl.u32 2102212464, %v695
    %v705 = vor.u32 %v703, %v704
    %v706 = vshll.u32 2102212464, %v694
    %v707 = vshrl.u32 920167782, %v695
    %v708 = vor.u32 %v706, %v707
    %v709 = vshll.u32 920167782, %v694
    %v710 = vshrl.u32 1326507024, %v695
    %v711 = vor.u32 %v709, %v710
    %vm712 = vcmp.lt.s32.totalorder %v693, 1
    %vm713 = vcmp.lt.s32.totalorder %v693, 2
    %vm714 = vcmp.lt.s32.totalorder %v693, 3
    %vm715 = vcmp.lt.s32.totalorder %v693, 4
    %v716 = vsel %vm712, %v696, %v699
    %v717 = vsel %vm715, %v705, 2102212464
    %v718 = vsel %vm714, %v702, %v717
    %v719 = vsel %vm713, %v716, %v718
    %v720 = vsel %vm712, %v699, %v702
    %v721 = vsel %vm715, %v708, 920167782
    %v722 = vsel %vm714, %v705, %v721
    %v723 = vsel %vm713, %v720, %v722
    %v724 = vsel %vm712, %v702, %v705
    %v725 = vsel %vm715, %v711, 1326507024
    %v726 = vsel %vm714, %v708, %v725
    %v727 = vsel %vm713, %v724, %v726
    %v728 = vshll.u32 %v688, 8
    %v729 = vmul.u32.u64.compose %v728, %v727
    %v730 = vextract.low.u32 %v729
    %v731 = vextract.high.u32 %v729
    %v732 = vmul.u32.u64.compose %v728, %v723
    %v733 = vextract.low.u32 %v732
    %v734 = vextract.high.u32 %v732
    %v735 = vmul.u32 %v728, %v719
    %v736 = vadd.s32 %v731, %v733
    %vm737 = vc.u32 %v731, %v733
    %v738 = vadd.s32 %v734, 1
    %v739 = vsel %vm737, %v738, %v734
    %v740 = vadd.s32 %v735, %v739
    %v741 = vadd.s32 %v740, 536870912
    %v742 = vshrl.u32 %v741, 30
    %v743 = vshll.u32 %v742, 30
    %v744 = vsub.s32 %v740, %v743
    %vm745 = vcmp.lt.s32.totalorder %v744, 0
    %v746 = vsub.s32 0, %v744
    %v747 = vsel %vm745, %v746, %v744
    %v748 = vclz %v747
    %v749 = vsub.s32 %v748, 2
    %vm750 = vcmp.gt.s32.totalorder 0, %v749
    %v751 = vsel %vm750, 0, %v749
    %v752 = vsub.s32 32, %v751
    %v753 = vshll.u32 %v744, %v751
    %v754 = vshrl.u32 %v736, %v752
    %v755 = vor.u32 %v753, %v754
    %v756 = vsub.s32 4294967266, %v751
    %v757 = vadd.s32 %v756, 127
    %v758 = vshll.u32 %v757, 23
    %v759 = vor.u32 4788187, %v758
    %v760 = vand.u32 2147483647, %v759
    %v762 = vcvt.s32.f32 %v755
    %v763 = vmul.f32 %v762, %v760
    %v764 = vxor.u32 %v763, 2147483648
    %v765 = vsel %vm682, %v764, %v763
    %v766 = vsub.s32 4, %v742
    %v767 = vsel %vm682, %v766, %v742
    %v768 = vsel %vm681, %v679, %v765
    %v769 = vsel %vm681, 0, %v767
    %v770 = vcosq.f32.pop %v768
    %v771 = vsinq.f32.pop %v768
    %vm772 = vweird.f32 %v679
    %v773 = vand.u32 %v769, 3
    %vm774 = vcmp.lt.s32.totalorder %v773, 2
    %vm775 = vcmp.eq.s32.totalorder %v773, 0
    %v776 = vxor.u32 %v771, 2147483648
    %v777 = vsel %vm775, %v770, %v776
    %vm778 = vcmp.eq.s32.totalorder %v773, 2
    %v779 = vxor.u32 %v770, 2147483648
    %v780 = vsel %vm778, %v779, %v771
    %v781 = vsel %vm774, %v777, %v780
    %v782 = vsel %vm772, nan, %v781
    %v783 = vmul.f32 %v782, 0.1
    %v784 = vsub.f32 %v151, %v783
    %v785 = vand.u32 2147483647, %v784
    %vm786 = vcmp.le.f32.partialorder %v785, 0.7853982
    %vm787 = vcmp.lt.s32.totalorder %v784, 0
    %v788 = vand.u32 %v784, 2139095040
    %v789 = vshrl.u32 %v788, 23
    %v790 = vsub.s32 %v789, 127
    %v791 = vand.u32 2147483647, %v784
    %v792 = vand.u32 %v791, 8388607
    %v793 = vor.u32 %v792, 8388608
    %v794 = vsub.s32 0, %v793
    %v795 = vadd.s32 %v790, 1
    %vm796 = vcmp.gt.s32.totalorder %v795, 0
    %v797 = vsel %vm796, %v795, 0
    %v798 = vshrl.u32 %v797, 5
    %v799 = vand.u32 %v797, 31
    %v800 = vsub.s32 32, %v799
    %v801 = vshrl.u32 683565275, %v800
    %v802 = vshll.u32 683565275, %v799
    %v803 = vshrl.u32 2475754826, %v800
    %v804 = vor.u32 %v802, %v803
    %v805 = vshll.u32 2475754826, %v799
    %v806 = vshrl.u32 2131351028, %v800
    %v807 = vor.u32 %v805, %v806
    %v808 = vshll.u32 2131351028, %v799
    %v809 = vshrl.u32 2102212464, %v800
    %v810 = vor.u32 %v808, %v809
    %v811 = vshll.u32 2102212464, %v799
    %v812 = vshrl.u32 920167782, %v800
    %v813 = vor.u32 %v811, %v812
    %v814 = vshll.u32 920167782, %v799
    %v815 = vshrl.u32 1326507024, %v800
    %v816 = vor.u32 %v814, %v815
    %vm817 = vcmp.lt.s32.totalorder %v798, 1
    %vm818 = vcmp.lt.s32.totalorder %v798, 2
    %vm819 = vcmp.lt.s32.totalorder %v798, 3
    %vm820 = vcmp.lt.s32.totalorder %v798, 4
    %v821 = vsel %vm817, %v801, %v804
    %v822 = vsel %vm820, %v810, 2102212464
    %v823 = vsel %vm819, %v807, %v822
    %v824 = vsel %vm818, %v821, %v823
    %v825 = vsel %vm817, %v804, %v807
    %v826 = vsel %vm820, %v813, 920167782
    %v827 = vsel %vm819, %v810, %v826
    %v828 = vsel %vm818, %v825, %v827
    %v829 = vsel %vm817, %v807, %v810
    %v830 = vsel %vm820, %v816, 1326507024
    %v831 = vsel %vm819, %v813, %v830
    %v832 = vsel %vm818, %v829, %v831
    %v833 = vshll.u32 %v793, 8
    %v834 = vmul.u32.u64.compose %v833, %v832
    %v835 = vextract.low.u32 %v834
    %v836 = vextract.high.u32 %v834
    %v837 = vmul.u32.u64.compose %v833, %v828
    %v838 = vextract.low.u32 %v837
    %v839 = vextract.high.u32 %v837
    %v840 = vmul.u32 %v833, %v824
    %v841 = vadd.s32 %v836, %v838
    %vm842 = vc.u32 %v836, %v838
    %v843 = vadd.s32 %v839, 1
    %v844 = vsel %vm842, %v843, %v839
    %v845 = vadd.s32 %v840, %v844
    %v846 = vadd.s32 %v845, 536870912
    %v847 = vshrl.u32 %v846, 30
    %v848 = vshll.u32 %v847, 30
    %v849 = vsub.s32 %v845, %v848
    %vm850 = vcmp.lt.s32.totalorder %v849, 0
    %v851 = vsub.s32 0, %v849
    %v852 = vsel %vm850, %v851, %v849
    %v853 = vclz %v852
    %v854 = vsub.s32 %v853, 2
    %vm855 = vcmp.gt.s32.totalorder 0, %v854
    %v856 = vsel %vm855, 0, %v854
    %v857 = vsub.s32 32, %v856
    %v858 = vshll.u32 %v849, %v856
    %v859 = vshrl.u32 %v841, %v857
    %v860 = vor.u32 %v858, %v859
    %v861 = vsub.s32 4294967266, %v856
    %v862 = vadd.s32 %v861, 127
    %v863 = vshll.u32 %v862, 23
    %v864 = vor.u32 4788187, %v863
    %v865 = vand.u32 2147483647, %v864
    %v867 = vcvt.s32.f32 %v860
    %v868 = vmul.f32 %v867, %v865
    %v869 = vxor.u32 %v868, 2147483648
    %v870 = vsel %vm787, %v869, %v868
    %v871 = vsub.s32 4, %v847
    %v872 = vsel %vm787, %v871, %v847
    %v873 = vsel %vm786, %v784, %v870
    %v874 = vsel %vm786, 0, %v872
    %v875 = vcosq.f32.pop %v873
    %v876 = vsinq.f32.pop %v873
    %vm877 = vweird.f32 %v784
    %v878 = vand.u32 %v874, 3
    %vm879 = vcmp.lt.s32.totalorder %v878, 2
    %vm880 = vcmp.eq.s32.totalorder %v878, 0
    %v881 = vxor.u32 %v876, 2147483648
    %v882 = vsel %vm880, %v875, %v881
    %vm883 = vcmp.eq.s32.totalorder %v878, 2
    %v884 = vxor.u32 %v875, 2147483648
    %v885 = vsel %vm883, %v884, %v876
    %v886 = vsel %vm879, %v882, %v885
    %v887 = vsel %vm877, nan, %v886
    %v888 = vmul.f32 %v887, 0.1
    %v889 = vsub.f32 %v151, %v888
    %v890 = vand.u32 2147483647, %v889
    %vm891 = vcmp.le.f32.partialorder %v890, 0.7853982
    %vm892 = vcmp.lt.s32.totalorder %v889, 0
    %v893 = vand.u32 %v889, 2139095040
    %v894 = vshrl.u32 %v893, 23
    %v895 = vsub.s32 %v894, 127
    %v896 = vand.u32 2147483647, %v889
    %v897 = vand.u32 %v896, 8388607
    %v898 = vor.u32 %v897, 8388608
    %v899 = vsub.s32 0, %v898
    %v900 = vadd.s32 %v895, 1
    %vm901 = vcmp.gt.s32.totalorder %v900, 0
    %v902 = vsel %vm901, %v900, 0
    %v903 = vshrl.u32 %v902, 5
    %v904 = vand.u32 %v902, 31
    %v905 = vsub.s32 32, %v904
    %v906 = vshrl.u32 683565275, %v905
    %v907 = vshll.u32 683565275, %v904
    %v908 = vshrl.u32 2475754826, %v905
    %v909 = vor.u32 %v907, %v908
    %v910 = vshll.u32 2475754826, %v904
    %v911 = vshrl.u32 2131351028, %v905
    %v912 = vor.u32 %v910, %v911
    %v913 = vshll.u32 2131351028, %v904
    %v914 = vshrl.u32 2102212464, %v905
    %v915 = vor.u32 %v913, %v914
    %v916 = vshll.u32 2102212464, %v904
    %v917 = vshrl.u32 920167782, %v905
    %v918 = vor.u32 %v916, %v917
    %v919 = vshll.u32 920167782, %v904
    %v920 = vshrl.u32 1326507024, %v905
    %v921 = vor.u32 %v919, %v920
    %vm922 = vcmp.lt.s32.totalorder %v903, 1
    %vm923 = vcmp.lt.s32.totalorder %v903, 2
    %vm924 = vcmp.lt.s32.totalorder %v903, 3
    %vm925 = vcmp.lt.s32.totalorder %v903, 4
    %v926 = vsel %vm922, %v906, %v909
    %v927 = vsel %vm925, %v915, 2102212464
    %v928 = vsel %vm924, %v912, %v927
    %v929 = vsel %vm923, %v926, %v928
    %v930 = vsel %vm922, %v909, %v912
    %v931 = vsel %vm925, %v918, 920167782
    %v932 = vsel %vm924, %v915, %v931
    %v933 = vsel %vm923, %v930, %v932
    %v934 = vsel %vm922, %v912, %v915
    %v935 = vsel %vm925, %v921, 1326507024
    %v936 = vsel %vm924, %v918, %v935
    %v937 = vsel %vm923, %v934, %v936
    %v938 = vshll.u32 %v898, 8
    %v939 = vmul.u32.u64.compose %v938, %v937
    %v940 = vextract.low.u32 %v939
    %v941 = vextract.high.u32 %v939
    %v942 = vmul.u32.u64.compose %v938, %v933
    %v943 = vextract.low.u32 %v942
    %v944 = vextract.high.u32 %v942
    %v945 = vmul.u32 %v938, %v929
    %v946 = vadd.s32 %v941, %v943
    %vm947 = vc.u32 %v941, %v943
    %v948 = vadd.s32 %v944, 1
    %v949 = vsel %vm947, %v948, %v944
    %v950 = vadd.s32 %v945, %v949
    %v951 = vadd.s32 %v950, 536870912
    %v952 = vshrl.u32 %v951, 30
    %v953 = vshll.u32 %v952, 30
    %v954 = vsub.s32 %v950, %v953
    %vm955 = vcmp.lt.s32.totalorder %v954, 0
    %v956 = vsub.s32 0, %v954
    %v957 = vsel %vm955, %v956, %v954
    %v958 = vclz %v957
    %v959 = vsub.s32 %v958, 2
    %vm960 = vcmp.gt.s32.totalorder 0, %v959
    %v961 = vsel %vm960, 0, %v959
    %v962 = vsub.s32 32, %v961
    %v963 = vshll.u32 %v954, %v961
    %v964 = vshrl.u32 %v946, %v962
    %v965 = vor.u32 %v963, %v964
    %v966 = vsub.s32 4294967266, %v961
    %v967 = vadd.s32 %v966, 127
    %v968 = vshll.u32 %v967, 23
    %v969 = vor.u32 4788187, %v968
    %v970 = vand.u32 2147483647, %v969
    %v972 = vcvt.s32.f32 %v965
    %v973 = vmul.f32 %v972, %v970
    %v974 = vxor.u32 %v973, 2147483648
    %v975 = vsel %vm892, %v974, %v973
    %v976 = vsub.s32 4, %v952
    %v977 = vsel %vm892, %v976, %v952
    %v978 = vsel %vm891, %v889, %v975
    %v979 = vsel %vm891, 0, %v977
    %v980 = vcosq.f32.pop %v978
    %v981 = vsinq.f32.pop %v978
    %vm982 = vweird.f32 %v889
    %v983 = vand.u32 %v979, 3
    %vm984 = vcmp.lt.s32.totalorder %v983, 2
    %vm985 = vcmp.eq.s32.totalorder %v983, 0
    %v986 = vxor.u32 %v981, 2147483648
    %v987 = vsel %vm985, %v980, %v986
    %vm988 = vcmp.eq.s32.totalorder %v983, 2
    %v989 = vxor.u32 %v980, 2147483648
    %v990 = vsel %vm988, %v989, %v981
    %v991 = vsel %vm984, %v987, %v990
    %v992 = vsel %vm982, nan, %v991
    %v993 = vmul.f32 %v992, 0.1
    %v994 = vsub.f32 %v151, %v993
    %v995 = vand.u32 2147483647, %v994
    %vm996 = vcmp.le.f32.partialorder %v995, 0.7853982
    %vm997 = vcmp.lt.s32.totalorder %v994, 0
    %v998 = vand.u32 %v994, 2139095040
    %v999 = vshrl.u32 %v998, 23
    %v1000 = vsub.s32 %v999, 127
    %v1001 = vand.u32 2147483647, %v994
    %v1002 = vand.u32 %v1001, 8388607
    %v1003 = vor.u32 %v1002, 8388608
    %v1004 = vsub.s32 0, %v1003
    %v1005 = vadd.s32 %v1000, 1
    %vm1006 = vcmp.gt.s32.totalorder %v1005, 0
    %v1007 = vsel %vm1006, %v1005, 0
    %v1008 = vshrl.u32 %v1007, 5
    %v1009 = vand.u32 %v1007, 31
    %v1010 = vsub.s32 32, %v1009
    %v1011 = vshrl.u32 683565275, %v1010
    %v1012 = vshll.u32 683565275, %v1009
    %v1013 = vshrl.u32 2475754826, %v1010
    %v1014 = vor.u32 %v1012, %v1013
    %v1015 = vshll.u32 2475754826, %v1009
    %v1016 = vshrl.u32 2131351028, %v1010
    %v1017 = vor.u32 %v1015, %v1016
    %v1018 = vshll.u32 2131351028, %v1009
    %v1019 = vshrl.u32 2102212464, %v1010
    %v1020 = vor.u32 %v1018, %v1019
    %v1021 = vshll.u32 2102212464, %v1009
    %v1022 = vshrl.u32 920167782, %v1010
    %v1023 = vor.u32 %v1021, %v1022
    %v1024 = vshll.u32 920167782, %v1009
    %v1025 = vshrl.u32 1326507024, %v1010
    %v1026 = vor.u32 %v1024, %v1025
    %vm1027 = vcmp.lt.s32.totalorder %v1008, 1
    %vm1028 = vcmp.lt.s32.totalorder %v1008, 2
    %vm1029 = vcmp.lt.s32.totalorder %v1008, 3
    %vm1030 = vcmp.lt.s32.totalorder %v1008, 4
    %v1031 = vsel %vm1027, %v1011, %v1014
    %v1032 = vsel %vm1030, %v1020, 2102212464
    %v1033 = vsel %vm1029, %v1017, %v1032
    %v1034 = vsel %vm1028, %v1031, %v1033
    %v1035 = vsel %vm1027, %v1014, %v1017
    %v1036 = vsel %vm1030, %v1023, 920167782
    %v1037 = vsel %vm1029, %v1020, %v1036
    %v1038 = vsel %vm1028, %v1035, %v1037
    %v1039 = vsel %vm1027, %v1017, %v1020
    %v1040 = vsel %vm1030, %v1026, 1326507024
    %v1041 = vsel %vm1029, %v1023, %v1040
    %v1042 = vsel %vm1028, %v1039, %v1041
    %v1043 = vshll.u32 %v1003, 8
    %v1044 = vmul.u32.u64.compose %v1043, %v1042
    %v1045 = vextract.low.u32 %v1044
    %v1046 = vextract.high.u32 %v1044
    %v1047 = vmul.u32.u64.compose %v1043, %v1038
    %v1048 = vextract.low.u32 %v1047
    %v1049 = vextract.high.u32 %v1047
    %v1050 = vmul.u32 %v1043, %v1034
    %v1051 = vadd.s32 %v1046, %v1048
    %vm1052 = vc.u32 %v1046, %v1048
    %v1053 = vadd.s32 %v1049, 1
    %v1054 = vsel %vm1052, %v1053, %v1049
    %v1055 = vadd.s32 %v1050, %v1054
    %v1056 = vadd.s32 %v1055, 536870912
    %v1057 = vshrl.u32 %v1056, 30
    %v1058 = vshll.u32 %v1057, 30
    %v1059 = vsub.s32 %v1055, %v1058
    %vm1060 = vcmp.lt.s32.totalorder %v1059, 0
    %v1061 = vsub.s32 0, %v1059
    %v1062 = vsel %vm1060, %v1061, %v1059
    %v1063 = vclz %v1062
    %v1064 = vsub.s32 %v1063, 2
    %vm1065 = vcmp.gt.s32.totalorder 0, %v1064
    %v1066 = vsel %vm1065, 0, %v1064
    %v1067 = vsub.s32 32, %v1066
    %v1068 = vshll.u32 %v1059, %v1066
    %v1069 = vshrl.u32 %v1051, %v1067
    %v1070 = vor.u32 %v1068, %v1069
    %v1071 = vsub.s32 4294967266, %v1066
    %v1072 = vadd.s32 %v1071, 127
    %v1073 = vshll.u32 %v1072, 23
    %v1074 = vor.u32 4788187, %v1073
    %v1075 = vand.u32 2147483647, %v1074
    %v1077 = vcvt.s32.f32 %v1070
    %v1078 = vmul.f32 %v1077, %v1075
    %v1079 = vxor.u32 %v1078, 2147483648
    %v1080 = vsel %vm997, %v1079, %v1078
    %v1081 = vsub.s32 4, %v1057
    %v1082 = vsel %vm997, %v1081, %v1057
    %v1083 = vsel %vm996, %v994, %v1080
    %v1084 = vsel %vm996, 0, %v1082
    %v1085 = vcosq.f32.pop %v1083
    %v1086 = vsinq.f32.pop %v1083
    %vm1087 = vweird.f32 %v994
    %v1088 = vand.u32 %v1084, 3
    %vm1089 = vcmp.lt.s32.totalorder %v1088, 2
    %vm1090 = vcmp.eq.s32.totalorder %v1088, 0
    %v1091 = vxor.u32 %v1086, 2147483648
    %v1092 = vsel %vm1090, %v1085, %v1091
    %vm1093 = vcmp.eq.s32.totalorder %v1088, 2
    %v1094 = vxor.u32 %v1085, 2147483648
    %v1095 = vsel %vm1093, %v1094, %v1086
    %v1096 = vsel %vm1089, %v1092, %v1095
    %v1097 = vsel %vm1087, nan, %v1096
    %v1098 = vmul.f32 %v1097, 0.1
    %v1099 = vsub.f32 %v151, %v1098
    %v1100 = vmul.f32 %v1099, 0.5
    %v1101 = vand.u32 2147483647, %v1100
    %vm1102 = vcmp.le.f32.partialorder %v1101, 0.7853982
    %vm1103 = vcmp.lt.s32.totalorder %v1100, 0
    %v1104 = vand.u32 %v1100, 2139095040
    %v1105 = vshrl.u32 %v1104, 23
    %v1106 = vsub.s32 %v1105, 127
    %v1107 = vand.u32 2147483647, %v1100
    %v1108 = vand.u32 %v1107, 8388607
    %v1109 = vor.u32 %v1108, 8388608
    %v1110 = vsub.s32 0, %v1109
    %v1111 = vadd.s32 %v1106, 1
    %vm1112 = vcmp.gt.s32.totalorder %v1111, 0
    %v1113 = vsel %vm1112, %v1111, 0
    %v1114 = vshrl.u32 %v1113, 5
    %v1115 = vand.u32 %v1113, 31
    %v1116 = vsub.s32 32, %v1115
    %v1117 = vshrl.u32 683565275, %v1116
    %v1118 = vshll.u32 683565275, %v1115
    %v1119 = vshrl.u32 2475754826, %v1116
    %v1120 = vor.u32 %v1118, %v1119
    %v1121 = vshll.u32 2475754826, %v1115
    %v1122 = vshrl.u32 2131351028, %v1116
    %v1123 = vor.u32 %v1121, %v1122
    %v1124 = vshll.u32 2131351028, %v1115
    %v1125 = vshrl.u32 2102212464, %v1116
    %v1126 = vor.u32 %v1124, %v1125
    %v1127 = vshll.u32 2102212464, %v1115
    %v1128 = vshrl.u32 920167782, %v1116
    %v1129 = vor.u32 %v1127, %v1128
    %v1130 = vshll.u32 920167782, %v1115
    %v1131 = vshrl.u32 1326507024, %v1116
    %v1132 = vor.u32 %v1130, %v1131
    %vm1133 = vcmp.lt.s32.totalorder %v1114, 1
    %vm1134 = vcmp.lt.s32.totalorder %v1114, 2
    %vm1135 = vcmp.lt.s32.totalorder %v1114, 3
    %vm1136 = vcmp.lt.s32.totalorder %v1114, 4
    %v1137 = vsel %vm1133, %v1117, %v1120
    %v1138 = vsel %vm1136, %v1126, 2102212464
    %v1139 = vsel %vm1135, %v1123, %v1138
    %v1140 = vsel %vm1134, %v1137, %v1139
    %v1141 = vsel %vm1133, %v1120, %v1123
    %v1142 = vsel %vm1136, %v1129, 920167782
    %v1143 = vsel %vm1135, %v1126, %v1142
    %v1144 = vsel %vm1134, %v1141, %v1143
    %v1145 = vsel %vm1133, %v1123, %v1126
    %v1146 = vsel %vm1136, %v1132, 1326507024
    %v1147 = vsel %vm1135, %v1129, %v1146
    %v1148 = vsel %vm1134, %v1145, %v1147
    %v1149 = vshll.u32 %v1109, 8
    %v1150 = vmul.u32.u64.compose %v1149, %v1148
    %v1151 = vextract.low.u32 %v1150
    %v1152 = vextract.high.u32 %v1150
    %v1153 = vmul.u32.u64.compose %v1149, %v1144
    %v1154 = vextract.low.u32 %v1153
    %v1155 = vextract.high.u32 %v1153
    %v1156 = vmul.u32 %v1149, %v1140
    %v1157 = vadd.s32 %v1152, %v1154
    %vm1158 = vc.u32 %v1152, %v1154
    %v1159 = vadd.s32 %v1155, 1
    %v1160 = vsel %vm1158, %v1159, %v1155
    %v1161 = vadd.s32 %v1156, %v1160
    %v1162 = vadd.s32 %v1161, 536870912
    %v1163 = vshrl.u32 %v1162, 30
    %v1164 = vshll.u32 %v1163, 30
    %v1165 = vsub.s32 %v1161, %v1164
    %vm1166 = vcmp.lt.s32.totalorder %v1165, 0
    %v1167 = vsub.s32 0, %v1165
    %v1168 = vsel %vm1166, %v1167, %v1165
    %v1169 = vclz %v1168
    %v1170 = vsub.s32 %v1169, 2
    %vm1171 = vcmp.gt.s32.totalorder 0, %v1170
    %v1172 = vsel %vm1171, 0, %v1170
    %v1173 = vsub.s32 32, %v1172
    %v1174 = vshll.u32 %v1165, %v1172
    %v1175 = vshrl.u32 %v1157, %v1173
    %v1176 = vor.u32 %v1174, %v1175
    %v1177 = vsub.s32 4294967266, %v1172
    %v1178 = vadd.s32 %v1177, 127
    %v1179 = vshll.u32 %v1178, 23
    %v1180 = vor.u32 4788187, %v1179
    %v1181 = vand.u32 2147483647, %v1180
    %v1183 = vcvt.s32.f32 %v1176
    %v1184 = vmul.f32 %v1183, %v1181
    %v1185 = vxor.u32 %v1184, 2147483648
    %v1186 = vsel %vm1103, %v1185, %v1184
    %v1187 = vsub.s32 4, %v1163
    %v1188 = vsel %vm1103, %v1187, %v1163
    %v1189 = vsel %vm1102, %v1100, %v1186
    %v1190 = vsel %vm1102, 0, %v1188
    %v1191 = vcosq.f32.pop %v1189
    %v1192 = vsinq.f32.pop %v1189
    %vm1193 = vweird.f32 %v1100
    %v1194 = vadd.s32 %v1190, 3
    %v1195 = vand.u32 %v1194, 3
    %vm1196 = vcmp.lt.s32.totalorder %v1195, 2
    %vm1197 = vcmp.eq.s32.totalorder %v1195, 0
    %v1198 = vxor.u32 %v1192, 2147483648
    %v1199 = vsel %vm1197, %v1191, %v1198
    %vm1200 = vcmp.eq.s32.totalorder %v1195, 2
    %v1201 = vxor.u32 %v1191, 2147483648
    %v1202 = vsel %vm1200, %v1201, %v1192
    %v1203 = vsel %vm1196, %v1199, %v1202
    %v1204 = vsel %vm1193, nan, %v1203
    %v1205 = vmul.f32 %v1204, %v1204
    %v1206 = vmul.f32 %v1205, 0.1
    %v1207 = vld [vmem:[#allocation7] sm:$0xff]
    %v1208 = vld [vmem:[#allocation7 + $0x8] sm:$0xff]
    %v1209 = vld [vmem:[#allocation7 + $0x10] sm:$0xff]
    %v1210 = vld [vmem:[#allocation7 + $0x18] sm:$0xff]
    %v1211 = vld [vmem:[#allocation7 + $0x20] sm:$0xff]
    %v1212 = vld [vmem:[#allocation7 + $0x28] sm:$0xff]
    %v1213 = vld [vmem:[#allocation7 + $0x30] sm:$0xff]
    %v1214 = vld [vmem:[#allocation7 + $0x38] sm:$0xff]
    %v1215 = vld [vmem:[#allocation7 + $0x40] sm:$0xff]
    %v1216 = vld [vmem:[#allocation7 + $0x48] sm:$0xff]
    %v1217 = vld [vmem:[#allocation7 + $0x50] sm:$0xff]
    %v1218 = vld [vmem:[#allocation7 + $0x58] sm:$0xff]
    %v1219 = vld [vmem:[#allocation7 + $0x60] sm:$0xff]
    %v1220 = vld [vmem:[#allocation7 + $0x68] sm:$0xff]
    %v1221 = vld [vmem:[#allocation7 + $0x70] sm:$0xff]
    %v1222 = vld [vmem:[#allocation7 + $0x78] sm:$0xff]
    %v1223 = vld [vmem:[%s4] sm:$0x1]
    %v1225 = vlaneseq
    %v1226 = vshrl.u32 %v1225, 7
    %v1227 = vsub.s32 0, %v1226
    %v1228 = vrot.slane %v1223, %v1227
    %1230 = vmatprep.subr.mxu0 0.0
    %1231 = vmatpush1.msra.mxu0 %v1207
    %1232 = vmatprep.subr.mxu0 0.0
    %1233 = vmatpush1.msra.mxu0 %v1208
    %1234 = vmatprep.subr.mxu0 0.0
    %1235 = vmatpush1.msra.mxu0 %v1209
    %1236 = vmatprep.subr.mxu0 0.0
    %1237 = vmatpush1.msra.mxu0 %v1210
    %1238 = vmatprep.subr.mxu0 0.0
    %1239 = vmatpush1.msra.mxu0 %v1211
    %1240 = vmatprep.subr.mxu0 0.0
    %1241 = vmatpush1.msra.mxu0 %v1212
    %1242 = vmatprep.subr.mxu0 0.0
    %1243 = vmatpush1.msra.mxu0 %v1213
    %1244 = vmatprep.subr.mxu0 0.0
    %1245 = vmatpush1.msra.mxu0 %v1214
    %1246 = vmatprep.subr.mxu0 0.0
    %1247 = vmatpush1.msra.mxu0 %v1215
    %1248 = vmatprep.subr.mxu0 0.0
    %1249 = vmatpush1.msra.mxu0 %v1216
    %1250 = vmatprep.subr.mxu0 0.0
    %1251 = vmatpush1.msra.mxu0 %v1217
    %1252 = vmatprep.subr.mxu0 0.0
    %1253 = vmatpush1.msra.mxu0 %v1218
    %1254 = vmatprep.subr.mxu0 0.0
    %1255 = vmatpush1.msra.mxu0 %v1219
    %1256 = vmatprep.subr.mxu0 0.0
    %1257 = vmatpush1.msra.mxu0 %v1220
    %1258 = vmatprep.subr.mxu0 0.0
    %1259 = vmatpush1.msra.mxu0 %v1221
    %1260 = vmatprep.subr.mxu0 0.0
    %1261 = vmatpush1.msra.mxu0 %v1222
    %1262 = vmatprep.subr.mxu0 0.0
    %1263 = vmatpush1.msra.mxu0 0.0
    %1264 = vmatprep.subr.mxu0 0.0
    %1265 = vmatpush1.msra.mxu0 0.0
    %1266 = vmatprep.subr.mxu0 0.0
    %1267 = vmatpush1.msra.mxu0 0.0
    %1268 = vmatprep.subr.mxu0 0.0
    %1269 = vmatpush1.msra.mxu0 0.0
    %1270 = vmatprep.subr.mxu0 0.0
    %1271 = vmatpush1.msra.mxu0 0.0
    %1272 = vmatprep.subr.mxu0 0.0
    %1273 = vmatpush1.msra.mxu0 0.0
    %1274 = vmatprep.subr.mxu0 0.0
    %1275 = vmatpush1.msra.mxu0 0.0
    %1276 = vmatprep.subr.mxu0 0.0
    %1277 = vmatpush1.msra.mxu0 0.0
    %1278 = vmatprep.subr.mxu0 0.0
    %1279 = vmatpush1.msra.mxu0 0.0
    %1280 = vmatprep.subr.mxu0 0.0
    %1281 = vmatpush1.msra.mxu0 0.0
    %1282 = vmatprep.subr.mxu0 0.0
    %1283 = vmatpush1.msra.mxu0 0.0
    %1284 = vmatprep.subr.mxu0 0.0
    %1285 = vmatpush1.msra.mxu0 0.0
    %1286 = vmatprep.subr.mxu0 0.0
    %1287 = vmatpush1.msra.mxu0 0.0
    %1288 = vmatprep.subr.mxu0 0.0
    %1289 = vmatpush1.msra.mxu0 0.0
    %1290 = vmatprep.subr.mxu0 0.0
    %1291 = vmatpush1.msra.mxu0 0.0
    %1292 = vmatprep.subr.mxu0 0.0
    %1293 = vmatpush1.msra.mxu0 0.0
    %1294 = vmatprep.mubr.f32.mxu0 0.0
    %1295 = vmatmul.mubr.f32.gmra.mrb[0].mxu0 %v1206
    %v1296 = vpop.f32.mrb[0].mxu0
    %v1297 = vadd.f32 %v1228, %v1296
    %v1298 = vpop.f32.mrb[0].mxu0
    %1299 = vdwg.mxu0
    %1300 = vst [vmem:[#allocation8] sm:$0xff] %v1297
    // Predicated region
    $region34: #{tpu_custom_call.1} parent=1 // pred_check
      _
    $region35: #{tpu_custom_call.1} parent=1 // pred_check_branch
      %1302 = sbr.rel (0) target = $region37
    $region36: #{tpu_custom_call.1} parent=1 // pred_region
      %s1304 = ssub.s32 128, 128
      %1305 = vsyncadd [#allocation4], %s1304
      %s1307 = sshll.u32 [#allocation8], 4
      %s1308 = int_to_ptr.vmem [resolvable:$true] %s1307
      %1310 = dma.vmem_to_hbm [thread:$0]  %s1308, 128, %s5, [#allocation4]
    $region37: #{tpu_custom_call.1} parent=1 // pred_fallthru
      _
    // Predicated region
    $region38: #{tpu_custom_call.1} parent=1 // pred_check
      _
    $region39: #{tpu_custom_call.1} parent=1 // pred_check_branch
      %1312 = sbr.rel (0) target = $region41
    $region40: #{tpu_custom_call.1} parent=1 // pred_region
      %1313 = dma.done [#allocation4], 128
    $region41: #{tpu_custom_call.1} parent=1 // pred_fallthru
      _
    %1314 = vsyncpa [#allocation3], 1
    %1315 = vsyncpa [#allocation6], 1
    %1316 = vsyncpa [#allocation4], 1

// kernel: tpu_custom_call.1
$region0: #{tpu_custom_call.1}
  #allocation0 [shape = 'u32[]', space=smem, size = 0x4, offset = 0x4, fixed_abs, tag = 'smem constant byte address 0x4 - core index']
  #allocation1 [shape = 'u32[144,128]{1,0:T(1,128)}', space=vmem, size = 0x12000, scoped, tag = 'internal scratch']
  %s0 = inlined_call_operand.hbm [shape: f32[8,128], index: 0, kind: input, shape index: {}]
  %s1 = inlined_call_operand.hbm [shape: f32[128,128], index: 1, kind: input, shape index: {}]
  %s2 = inlined_call_operand.vmem [shape: f32[1,128], index: 2, kind: input, shape index: {}]
  %s3 = inlined_call_operand.hbm [shape: f32[128,128], index: 3, kind: input, shape index: {}]
  %s4 = inlined_call_operand.vmem [shape: f32[1,128], index: 4, kind: input, shape index: {}]
  %s5 = inlined_call_operand.hbm [shape: f32[8,128], index: 5, kind: output, shape index: {}]
  %s6 = sld [smem:[#allocation0]]
  $region42: #{tpu_custom_call.1} parent=0
    _
  %s8 = ssub.s32 1, %s6
  %s9 = scalar_select 0, %s8, %s6
  $region1: #{tpu_custom_call.1} parent=0
    #allocation2 [shape = 'u8[4096]{0}', space=vmem, size = 0x1000, scoped, tag = 'input window, operand 0, single buffered']
    #allocation3 [shape = 's32[1]{0}', space=sflag, size = 0x4, scoped, tag = 'scoped memory for tpu_custom_call.1']
    #allocation4 [shape = 's32[1]{0}', space=sflag, size = 0x4, scoped, tag = 'scoped memory for tpu_custom_call.1']
    #allocation5 [shape = 'u8[65536]{0}', space=vmem, size = 0x10000, scoped, tag = 'input window, operand 1, single buffered']
    #allocation6 [shape = 's32[1]{0}', space=sflag, size = 0x4, scoped, tag = 'scoped memory for tpu_custom_call.1']
    #allocation7 [shape = 'u8[65536]{0}', space=vmem, size = 0x10000, scoped, tag = 'input window, operand 3, single buffered']
    #allocation8 [shape = 'u8[4096]{0}', space=vmem, size = 0x1000, scoped, tag = 'output window, operand 0, single buffered']
    %10 = vsyncpa [#allocation3], 0
    %11 = vsyncpa [#allocation6], 0
    %12 = vsyncpa [#allocation4], 0
    // Predicated region
    $region2: #{tpu_custom_call.1} parent=1 // pred_check
      _
    $region3: #{tpu_custom_call.1} parent=1 // pred_check_branch
      %14 = sbr.rel (0) target = $region5
    $region4: #{tpu_custom_call.1} parent=1 // pred_region
      %s16 = ssub.s32 128, 128
      %17 = vsyncadd [#allocation3], %s16
      %s19 = sshll.u32 [#allocation2], 4
      %s20 = int_to_ptr.vmem [resolvable:$true] %s19
      %22 = dma.hbm_to_vmem [thread:$0]  %s0, 128, %s20, [#allocation3]
    $region5: #{tpu_custom_call.1} parent=1 // pred_fallthru
      _
    // Predicated region
    $region6: #{tpu_custom_call.1} parent=1 // pred_check
      _
    $region7: #{tpu_custom_call.1} parent=1 // pred_check_branch
      %24 = sbr.rel (0) target = $region9
    $region8: #{tpu_custom_call.1} parent=1 // pred_region
      %s26 = ssub.s32 2048, 2048
      %27 = vsyncadd [#allocation6], %s26
      %s28 = sshll.u32 [#allocation5], 4
      %s29 = int_to_ptr.vmem [resolvable:$true] %s28
      %34 = dma.hbm_to_vmem [thread:$0]  %s1, 2048, %s29, [#allocation6], 128, 128, 8
    $region9: #{tpu_custom_call.1} parent=1 // pred_fallthru
      _
    // Predicated region
    $region10: #{tpu_custom_call.1} parent=1 // pred_check
      _
    $region11: #{tpu_custom_call.1} parent=1 // pred_check_branch
      %36 = sbr.rel (0) target = $region13
    $region12: #{tpu_custom_call.1} parent=1 // pred_region
      _
    $region13: #{tpu_custom_call.1} parent=1 // pred_fallthru
      _
    // Predicated region
    $region14: #{tpu_custom_call.1} parent=1 // pred_check
      _
    $region15: #{tpu_custom_call.1} parent=1 // pred_check_branch
      %38 = sbr.rel (0) target = $region17
    $region16: #{tpu_custom_call.1} parent=1 // pred_region
      %s40 = ssub.s32 2048, 2048
      %41 = vsyncadd [#allocation6], %s40
      %s42 = sshll.u32 [#allocation7], 4
      %s43 = int_to_ptr.vmem [resolvable:$true] %s42
      %48 = dma.hbm_to_vmem [thread:$0]  %s3, 2048, %s43, [#allocation6], 128, 128, 8
    $region17: #{tpu_custom_call.1} parent=1 // pred_fallthru
      _
    // Predicated region
    $region18: #{tpu_custom_call.1} parent=1 // pred_check
      _
    $region19: #{tpu_custom_call.1} parent=1 // pred_check_branch
      %50 = sbr.rel (0) target = $region21
    $region20: #{tpu_custom_call.1} parent=1 // pred_region
      _
    $region21: #{tpu_custom_call.1} parent=1 // pred_fallthru
      _
    // Predicated region
    $region22: #{tpu_custom_call.1} parent=1 // pred_check
      _
    $region23: #{tpu_custom_call.1} parent=1 // pred_check_branch
      %52 = sbr.rel (0) target = $region25
    $region24: #{tpu_custom_call.1} parent=1 // pred_region
      %53 = dma.done [#allocation3], 128
    $region25: #{tpu_custom_call.1} parent=1 // pred_fallthru
      _
    // Predicated region
    $region26: #{tpu_custom_call.1} parent=1 // pred_check
      _
    $region27: #{tpu_custom_call.1} parent=1 // pred_check_branch
      %55 = sbr.rel (0) target = $region29
    $region28: #{tpu_custom_call.1} parent=1 // pred_region
      %56 = dma.done [#allocation6], 2048
    $region29: #{tpu_custom_call.1} parent=1 // pred_fallthru
      _
    // Predicated region
    $region30: #{tpu_custom_call.1} parent=1 // pred_check
      _
    $region31: #{tpu_custom_call.1} parent=1 // pred_check_branch
      %58 = sbr.rel (0) target = $region33
    $region32: #{tpu_custom_call.1} parent=1 // pred_region
      %59 = dma.done [#allocation6], 2048
    $region33: #{tpu_custom_call.1} parent=1 // pred_fallthru
      _
    %v60 = vld [vmem:[#allocation2] sm:$0xff]
    %v61 = vld [vmem:[#allocation5] sm:$0xff]
    %v62 = vld [vmem:[#allocation5 + $0x8] sm:$0xff]
    %v63 = vld [vmem:[#allocation5 + $0x10] sm:$0xff]
    %v64 = vld [vmem:[#allocation5 + $0x18] sm:$0xff]
    %v65 = vld [vmem:[#allocation5 + $0x20] sm:$0xff]
    %v66 = vld [vmem:[#allocation5 + $0x28] sm:$0xff]
    %v67 = vld [vmem:[#allocation5 + $0x30] sm:$0xff]
    %v68 = vld [vmem:[#allocation5 + $0x38] sm:$0xff]
    %v69 = vld [vmem:[#allocation5 + $0x40] sm:$0xff]
    %v70 = vld [vmem:[#allocation5 + $0x48] sm:$0xff]
    %v71 = vld [vmem:[#allocation5 + $0x50] sm:$0xff]
    %v72 = vld [vmem:[#allocation5 + $0x58] sm:$0xff]
    %v73 = vld [vmem:[#allocation5 + $0x60] sm:$0xff]
    %v74 = vld [vmem:[#allocation5 + $0x68] sm:$0xff]
    %v75 = vld [vmem:[#allocation5 + $0x70] sm:$0xff]
    %v76 = vld [vmem:[#allocation5 + $0x78] sm:$0xff]
    %v77 = vld [vmem:[%s2] sm:$0x1]
    %v79 = vlaneseq
    %v80 = vshrl.u32 %v79, 7
    %v81 = vsub.s32 0, %v80
    %v82 = vrot.slane %v77, %v81
    %84 = vmatprep.subr.mxu0 0.0
    %85 = vmatpush1.msra.mxu0 %v61
    %86 = vmatprep.subr.mxu0 0.0
    %87 = vmatpush1.msra.mxu0 %v62
    %88 = vmatprep.subr.mxu0 0.0
    %89 = vmatpush1.msra.mxu0 %v63
    %90 = vmatprep.subr.mxu0 0.0
    %91 = vmatpush1.msra.mxu0 %v64
    %92 = vmatprep.subr.mxu0 0.0
    %93 = vmatpush1.msra.mxu0 %v65
    %94 = vmatprep.subr.mxu0 0.0
    %95 = vmatpush1.msra.mxu0 %v66
    %96 = vmatprep.subr.mxu0 0.0
    %97 = vmatpush1.msra.mxu0 %v67
    %98 = vmatprep.subr.mxu0 0.0
    %99 = vmatpush1.msra.mxu0 %v68
    %100 = vmatprep.subr.mxu0 0.0
    %101 = vmatpush1.msra.mxu0 %v69
    %102 = vmatprep.subr.mxu0 0.0
    %103 = vmatpush1.msra.mxu0 %v70
    %104 = vmatprep.subr.mxu0 0.0
    %105 = vmatpush1.msra.mxu0 %v71
    %106 = vmatprep.subr.mxu0 0.0
    %107 = vmatpush1.msra.mxu0 %v72
    %108 = vmatprep.subr.mxu0 0.0
    %109 = vmatpush1.msra.mxu0 %v73
    %110 = vmatprep.subr.mxu0 0.0
    %111 = vmatpush1.msra.mxu0 %v74
    %112 = vmatprep.subr.mxu0 0.0
    %113 = vmatpush1.msra.mxu0 %v75
    %114 = vmatprep.subr.mxu0 0.0
    %115 = vmatpush1.msra.mxu0 %v76
    %116 = vmatprep.subr.mxu0 0.0
    %117 = vmatpush1.msra.mxu0 0.0
    %118 = vmatprep.subr.mxu0 0.0
    %119 = vmatpush1.msra.mxu0 0.0
    %120 = vmatprep.subr.mxu0 0.0
    %121 = vmatpush1.msra.mxu0 0.0
    %122 = vmatprep.subr.mxu0 0.0
    %123 = vmatpush1.msra.mxu0 0.0
    %124 = vmatprep.subr.mxu0 0.0
    %125 = vmatpush1.msra.mxu0 0.0
    %126 = vmatprep.subr.mxu0 0.0
    %127 = vmatpush1.msra.mxu0 0.0
    %128 = vmatprep.subr.mxu0 0.0
    %129 = vmatpush1.msra.mxu0 0.0
    %130 = vmatprep.subr.mxu0 0.0
    %131 = vmatpush1.msra.mxu0 0.0
    %132 = vmatprep.subr.mxu0 0.0
    %133 = vmatpush1.msra.mxu0 0.0
    %134 = vmatprep.subr.mxu0 0.0
    %135 = vmatpush1.msra.mxu0 0.0
    %136 = vmatprep.subr.mxu0 0.0
    %137 = vmatpush1.msra.mxu0 0.0
    %138 = vmatprep.subr.mxu0 0.0
    %139 = vmatpush1.msra.mxu0 0.0
    %140 = vmatprep.subr.mxu0 0.0
    %141 = vmatpush1.msra.mxu0 0.0
    %142 = vmatprep.subr.mxu0 0.0
    %143 = vmatpush1.msra.mxu0 0.0
    %144 = vmatprep.subr.mxu0 0.0
    %145 = vmatpush1.msra.mxu0 0.0
    %146 = vmatprep.subr.mxu0 0.0
    %147 = vmatpush1.msra.mxu0 0.0
    %148 = vmatprep.mubr.f32.mxu0 0.0
    %149 = vmatmul.mubr.f32.gmra.mrb[0].mxu0 %v60
    %v150 = vpop.f32.mrb[0].mxu0
    %v151 = vadd.f32 %v82, %v150
    %v152 = vpop.f32.mrb[0].mxu0
    %153 = vdwg.mxu0
    %v154 = vsub.f32 %v151, 0.1
    %v155 = vand.u32 2147483647, %v154
    %vm156 = vcmp.le.f32.partialorder %v155, 0.7853982
    %vm157 = vcmp.lt.s32.totalorder %v154, 0
    %v158 = vand.u32 %v154, 2139095040
    %v159 = vshrl.u32 %v158, 23
    %v160 = vsub.s32 %v159, 127
    %v161 = vand.u32 2147483647, %v154
    %v162 = vand.u32 %v161, 8388607
    %v163 = vor.u32 %v162, 8388608
    %v164 = vsub.s32 0, %v163
    %v165 = vadd.s32 %v160, 1
    %vm166 = vcmp.gt.s32.totalorder %v165, 0
    %v167 = vsel %vm166, %v165, 0
    %v168 = vshrl.u32 %v167, 5
    %v169 = vand.u32 %v167, 31
    %v170 = vsub.s32 32, %v169
    %v171 = vshrl.u32 683565275, %v170
    %v172 = vshll.u32 683565275, %v169
    %v173 = vshrl.u32 2475754826, %v170
    %v174 = vor.u32 %v172, %v173
    %v175 = vshll.u32 2475754826, %v169
    %v176 = vshrl.u32 2131351028, %v170
    %v177 = vor.u32 %v175, %v176
    %v178 = vshll.u32 2131351028, %v169
    %v179 = vshrl.u32 2102212464, %v170
    %v180 = vor.u32 %v178, %v179
    %v181 = vshll.u32 2102212464, %v169
    %v182 = vshrl.u32 920167782, %v170
    %v183 = vor.u32 %v181, %v182
    %v184 = vshll.u32 920167782, %v169
    %v185 = vshrl.u32 1326507024, %v170
    %v186 = vor.u32 %v184, %v185
    %vm187 = vcmp.lt.s32.totalorder %v168, 1
    %vm188 = vcmp.lt.s32.totalorder %v168, 2
    %vm189 = vcmp.lt.s32.totalorder %v168, 3
    %vm190 = vcmp.lt.s32.totalorder %v168, 4
    %v191 = vsel %vm187, %v171, %v174
    %v192 = vsel %vm190, %v180, 2102212464
    %v193 = vsel %vm189, %v177, %v192
    %v194 = vsel %vm188, %v191, %v193
    %v195 = vsel %vm187, %v174, %v177
    %v196 = vsel %vm190, %v183, 920167782
    %v197 = vsel %vm189, %v180, %v196
    %v198 = vsel %vm188, %v195, %v197
    %v199 = vsel %vm187, %v177, %v180
    %v200 = vsel %vm190, %v186, 1326507024
    %v201 = vsel %vm189, %v183, %v200
    %v202 = vsel %vm188, %v199, %v201
    %v203 = vshll.u32 %v163, 8
    %v204 = vmul.u32.u64.compose %v203, %v202
    %v205 = vextract.low.u32 %v204
    %v206 = vextract.high.u32 %v204
    %v207 = vmul.u32.u64.compose %v203, %v198
    %v208 = vextract.low.u32 %v207
    %v209 = vextract.high.u32 %v207
    %v210 = vmul.u32 %v203, %v194
    %v211 = vadd.s32 %v206, %v208
    %vm212 = vc.u32 %v206, %v208
    %v213 = vadd.s32 %v209, 1
    %v214 = vsel %vm212, %v213, %v209
    %v215 = vadd.s32 %v210, %v214
    %v216 = vadd.s32 %v215, 536870912
    %v217 = vshrl.u32 %v216, 30
    %v218 = vshll.u32 %v217, 30
    %v219 = vsub.s32 %v215, %v218
    %vm220 = vcmp.lt.s32.totalorder %v219, 0
    %v221 = vsub.s32 0, %v219
    %v222 = vsel %vm220, %v221, %v219
    %v223 = vclz %v222
    %v224 = vsub.s32 %v223, 2
    %vm225 = vcmp.gt.s32.totalorder 0, %v224
    %v226 = vsel %vm225, 0, %v224
    %v227 = vsub.s32 32, %v226
    %v228 = vshll.u32 %v219, %v226
    %v229 = vshrl.u32 %v211, %v227
    %v230 = vor.u32 %v228, %v229
    %v231 = vsub.s32 4294967266, %v226
    %v232 = vadd.s32 %v231, 127
    %v233 = vshll.u32 %v232, 23
    %v234 = vor.u32 4788187, %v233
    %v235 = vand.u32 2147483647, %v234
    %v237 = vcvt.s32.f32 %v230
    %v238 = vmul.f32 %v237, %v235
    %v239 = vxor.u32 %v238, 2147483648
    %v240 = vsel %vm157, %v239, %v238
    %v241 = vsub.s32 4, %v217
    %v242 = vsel %vm157, %v241, %v217
    %v243 = vsel %vm156, %v154, %v240
    %v244 = vsel %vm156, 0, %v242
    %v245 = vcosq.f32.pop %v243
    %v246 = vsinq.f32.pop %v243
    %vm247 = vweird.f32 %v154
    %v248 = vand.u32 %v244, 3
    %vm249 = vcmp.lt.s32.totalorder %v248, 2
    %vm250 = vcmp.eq.s32.totalorder %v248, 0
    %v251 = vxor.u32 %v246, 2147483648
    %v252 = vsel %vm250, %v245, %v251
    %vm253 = vcmp.eq.s32.totalorder %v248, 2
    %v254 = vxor.u32 %v245, 2147483648
    %v255 = vsel %vm253, %v254, %v246
    %v256 = vsel %vm249, %v252, %v255
    %v257 = vsel %vm247, nan, %v256
    %v258 = vmul.f32 %v257, 0.1
    %v259 = vsub.f32 %v151, %v258
    %v260 = vand.u32 2147483647, %v259
    %vm261 = vcmp.le.f32.partialorder %v260, 0.7853982
    %vm262 = vcmp.lt.s32.totalorder %v259, 0
    %v263 = vand.u32 %v259, 2139095040
    %v264 = vshrl.u32 %v263, 23
    %v265 = vsub.s32 %v264, 127
    %v266 = vand.u32 2147483647, %v259
    %v267 = vand.u32 %v266, 8388607
    %v268 = vor.u32 %v267, 8388608
    %v269 = vsub.s32 0, %v268
    %v270 = vadd.s32 %v265, 1
    %vm271 = vcmp.gt.s32.totalorder %v270, 0
    %v272 = vsel %vm271, %v270, 0
    %v273 = vshrl.u32 %v272, 5
    %v274 = vand.u32 %v272, 31
    %v275 = vsub.s32 32, %v274
    %v276 = vshrl.u32 683565275, %v275
    %v277 = vshll.u32 683565275, %v274
    %v278 = vshrl.u32 2475754826, %v275
    %v279 = vor.u32 %v277, %v278
    %v280 = vshll.u32 2475754826, %v274
    %v281 = vshrl.u32 2131351028, %v275
    %v282 = vor.u32 %v280, %v281
    %v283 = vshll.u32 2131351028, %v274
    %v284 = vshrl.u32 2102212464, %v275
    %v285 = vor.u32 %v283, %v284
    %v286 = vshll.u32 2102212464, %v274
    %v287 = vshrl.u32 920167782, %v275
    %v288 = vor.u32 %v286, %v287
    %v289 = vshll.u32 920167782, %v274
    %v290 = vshrl.u32 1326507024, %v275
    %v291 = vor.u32 %v289, %v290
    %vm292 = vcmp.lt.s32.totalorder %v273, 1
    %vm293 = vcmp.lt.s32.totalorder %v273, 2
    %vm294 = vcmp.lt.s32.totalorder %v273, 3
    %vm295 = vcmp.lt.s32.totalorder %v273, 4
    %v296 = vsel %vm292, %v276, %v279
    %v297 = vsel %vm295, %v285, 2102212464
    %v298 = vsel %vm294, %v282, %v297
    %v299 = vsel %vm293, %v296, %v298
    %v300 = vsel %vm292, %v279, %v282
    %v301 = vsel %vm295, %v288, 920167782
    %v302 = vsel %vm294, %v285, %v301
    %v303 = vsel %vm293, %v300, %v302
    %v304 = vsel %vm292, %v282, %v285
    %v305 = vsel %vm295, %v291, 1326507024
    %v306 = vsel %vm294, %v288, %v305
    %v307 = vsel %vm293, %v304, %v306
    %v308 = vshll.u32 %v268, 8
    %v309 = vmul.u32.u64.compose %v308, %v307
    %v310 = vextract.low.u32 %v309
    %v311 = vextract.high.u32 %v309
    %v312 = vmul.u32.u64.compose %v308, %v303
    %v313 = vextract.low.u32 %v312
    %v314 = vextract.high.u32 %v312
    %v315 = vmul.u32 %v308, %v299
    %v316 = vadd.s32 %v311, %v313
    %vm317 = vc.u32 %v311, %v313
    %v318 = vadd.s32 %v314, 1
    %v319 = vsel %vm317, %v318, %v314
    %v320 = vadd.s32 %v315, %v319
    %v321 = vadd.s32 %v320, 536870912
    %v322 = vshrl.u32 %v321, 30
    %v323 = vshll.u32 %v322, 30
    %v324 = vsub.s32 %v320, %v323
    %vm325 = vcmp.lt.s32.totalorder %v324, 0
    %v326 = vsub.s32 0, %v324
    %v327 = vsel %vm325, %v326, %v324
    %v328 = vclz %v327
    %v329 = vsub.s32 %v328, 2
    %vm330 = vcmp.gt.s32.totalorder 0, %v329
    %v331 = vsel %vm330, 0, %v329
    %v332 = vsub.s32 32, %v331
    %v333 = vshll.u32 %v324, %v331
    %v334 = vshrl.u32 %v316, %v332
    %v335 = vor.u32 %v333, %v334
    %v336 = vsub.s32 4294967266, %v331
    %v337 = vadd.s32 %v336, 127
    %v338 = vshll.u32 %v337, 23
    %v339 = vor.u32 4788187, %v338
    %v340 = vand.u32 2147483647, %v339
    %v342 = vcvt.s32.f32 %v335
    %v343 = vmul.f32 %v342, %v340
    %v344 = vxor.u32 %v343, 2147483648
    %v345 = vsel %vm262, %v344, %v343
    %v346 = vsub.s32 4, %v322
    %v347 = vsel %vm262, %v346, %v322
    %v348 = vsel %vm261, %v259, %v345
    %v349 = vsel %vm261, 0, %v347
    %v350 = vcosq.f32.pop %v348
    %v351 = vsinq.f32.pop %v348
    %vm352 = vweird.f32 %v259
    %v353 = vand.u32 %v349, 3
    %vm354 = vcmp.lt.s32.totalorder %v353, 2
    %vm355 = vcmp.eq.s32.totalorder %v353, 0
    %v356 = vxor.u32 %v351, 2147483648
    %v357 = vsel %vm355, %v350, %v356
    %vm358 = vcmp.eq.s32.totalorder %v353, 2
    %v359 = vxor.u32 %v350, 2147483648
    %v360 = vsel %vm358, %v359, %v351
    %v361 = vsel %vm354, %v357, %v360
    %v362 = vsel %vm352, nan, %v361
    %v363 = vmul.f32 %v362, 0.1
    %v364 = vsub.f32 %v151, %v363
    %v365 = vand.u32 2147483647, %v364
    %vm366 = vcmp.le.f32.partialorder %v365, 0.7853982
    %vm367 = vcmp.lt.s32.totalorder %v364, 0
    %v368 = vand.u32 %v364, 2139095040
    %v369 = vshrl.u32 %v368, 23
    %v370 = vsub.s32 %v369, 127
    %v371 = vand.u32 2147483647, %v364
    %v372 = vand.u32 %v371, 8388607
    %v373 = vor.u32 %v372, 8388608
    %v374 = vsub.s32 0, %v373
    %v375 = vadd.s32 %v370, 1
    %vm376 = vcmp.gt.s32.totalorder %v375, 0
    %v377 = vsel %vm376, %v375, 0
    %v378 = vshrl.u32 %v377, 5
    %v379 = vand.u32 %v377, 31
    %v380 = vsub.s32 32, %v379
    %v381 = vshrl.u32 683565275, %v380
    %v382 = vshll.u32 683565275, %v379
    %v383 = vshrl.u32 2475754826, %v380
    %v384 = vor.u32 %v382, %v383
    %v385 = vshll.u32 2475754826, %v379
    %v386 = vshrl.u32 2131351028, %v380
    %v387 = vor.u32 %v385, %v386
    %v388 = vshll.u32 2131351028, %v379
    %v389 = vshrl.u32 2102212464, %v380
    %v390 = vor.u32 %v388, %v389
    %v391 = vshll.u32 2102212464, %v379
    %v392 = vshrl.u32 920167782, %v380
    %v393 = vor.u32 %v391, %v392
    %v394 = vshll.u32 920167782, %v379
    %v395 = vshrl.u32 1326507024, %v380
    %v396 = vor.u32 %v394, %v395
    %vm397 = vcmp.lt.s32.totalorder %v378, 1
    %vm398 = vcmp.lt.s32.totalorder %v378, 2
    %vm399 = vcmp.lt.s32.totalorder %v378, 3
    %vm400 = vcmp.lt.s32.totalorder %v378, 4
    %v401 = vsel %vm397, %v381, %v384
    %v402 = vsel %vm400, %v390, 2102212464
    %v403 = vsel %vm399, %v387, %v402
    %v404 = vsel %vm398, %v401, %v403
    %v405 = vsel %vm397, %v384, %v387
    %v406 = vsel %vm400, %v393, 920167782
    %v407 = vsel %vm399, %v390, %v406
    %v408 = vsel %vm398, %v405, %v407
    %v409 = vsel %vm397, %v387, %v390
    %v410 = vsel %vm400, %v396, 1326507024
    %v411 = vsel %vm399, %v393, %v410
    %v412 = vsel %vm398, %v409, %v411
    %v413 = vshll.u32 %v373, 8
    %v414 = vmul.u32.u64.compose %v413, %v412
    %v415 = vextract.low.u32 %v414
    %v416 = vextract.high.u32 %v414
    %v417 = vmul.u32.u64.compose %v413, %v408
    %v418 = vextract.low.u32 %v417
    %v419 = vextract.high.u32 %v417
    %v420 = vmul.u32 %v413, %v404
    %v421 = vadd.s32 %v416, %v418
    %vm422 = vc.u32 %v416, %v418
    %v423 = vadd.s32 %v419, 1
    %v424 = vsel %vm422, %v423, %v419
    %v425 = vadd.s32 %v420, %v424
    %v426 = vadd.s32 %v425, 536870912
    %v427 = vshrl.u32 %v426, 30
    %v428 = vshll.u32 %v427, 30
    %v429 = vsub.s32 %v425, %v428
    %vm430 = vcmp.lt.s32.totalorder %v429, 0
    %v431 = vsub.s32 0, %v429
    %v432 = vsel %vm430, %v431, %v429
    %v433 = vclz %v432
    %v434 = vsub.s32 %v433, 2
    %vm435 = vcmp.gt.s32.totalorder 0, %v434
    %v436 = vsel %vm435, 0, %v434
    %v437 = vsub.s32 32, %v436
    %v438 = vshll.u32 %v429, %v436
    %v439 = vshrl.u32 %v421, %v437
    %v440 = vor.u32 %v438, %v439
    %v441 = vsub.s32 4294967266, %v436
    %v442 = vadd.s32 %v441, 127
    %v443 = vshll.u32 %v442, 23
    %v444 = vor.u32 4788187, %v443
    %v445 = vand.u32 2147483647, %v444
    %v447 = vcvt.s32.f32 %v440
    %v448 = vmul.f32 %v447, %v445
    %v449 = vxor.u32 %v448, 2147483648
    %v450 = vsel %vm367, %v449, %v448
    %v451 = vsub.s32 4, %v427
    %v452 = vsel %vm367, %v451, %v427
    %v453 = vsel %vm366, %v364, %v450
    %v454 = vsel %vm366, 0, %v452
    %v455 = vcosq.f32.pop %v453
    %v456 = vsinq.f32.pop %v453
    %vm457 = vweird.f32 %v364
    %v458 = vand.u32 %v454, 3
    %vm459 = vcmp.lt.s32.totalorder %v458, 2
    %vm460 = vcmp.eq.s32.totalorder %v458, 0
    %v461 = vxor.u32 %v456, 2147483648
    %v462 = vsel %vm460, %v455, %v461
    %vm463 = vcmp.eq.s32.totalorder %v458, 2
    %v464 = vxor.u32 %v455, 2147483648
    %v465 = vsel %vm463, %v464, %v456
    %v466 = vsel %vm459, %v462, %v465
    %v467 = vsel %vm457, nan, %v466
    %v468 = vmul.f32 %v467, 0.1
    %v469 = vsub.f32 %v151, %v468
    %v470 = vand.u32 2147483647, %v469
    %vm471 = vcmp.le.f32.partialorder %v470, 0.7853982
    %vm472 = vcmp.lt.s32.totalorder %v469, 0
    %v473 = vand.u32 %v469, 2139095040
    %v474 = vshrl.u32 %v473, 23
    %v475 = vsub.s32 %v474, 127
    %v476 = vand.u32 2147483647, %v469
    %v477 = vand.u32 %v476, 8388607
    %v478 = vor.u32 %v477, 8388608
    %v479 = vsub.s32 0, %v478
    %v480 = vadd.s32 %v475, 1
    %vm481 = vcmp.gt.s32.totalorder %v480, 0
    %v482 = vsel %vm481, %v480, 0
    %v483 = vshrl.u32 %v482, 5
    %v484 = vand.u32 %v482, 31
    %v485 = vsub.s32 32, %v484
    %v486 = vshrl.u32 683565275, %v485
    %v487 = vshll.u32 683565275, %v484
    %v488 = vshrl.u32 2475754826, %v485
    %v489 = vor.u32 %v487, %v488
    %v490 = vshll.u32 2475754826, %v484
    %v491 = vshrl.u32 2131351028, %v485
    %v492 = vor.u32 %v490, %v491
    %v493 = vshll.u32 2131351028, %v484
    %v494 = vshrl.u32 2102212464, %v485
    %v495 = vor.u32 %v493, %v494
    %v496 = vshll.u32 2102212464, %v484
    %v497 = vshrl.u32 920167782, %v485
    %v498 = vor.u32 %v496, %v497
    %v499 = vshll.u32 920167782, %v484
    %v500 = vshrl.u32 1326507024, %v485
    %v501 = vor.u32 %v499, %v500
    %vm502 = vcmp.lt.s32.totalorder %v483, 1
    %vm503 = vcmp.lt.s32.totalorder %v483, 2
    %vm504 = vcmp.lt.s32.totalorder %v483, 3
    %vm505 = vcmp.lt.s32.totalorder %v483, 4
    %v506 = vsel %vm502, %v486, %v489
    %v507 = vsel %vm505, %v495, 2102212464
    %v508 = vsel %vm504, %v492, %v507
    %v509 = vsel %vm503, %v506, %v508
    %v510 = vsel %vm502, %v489, %v492
    %v511 = vsel %vm505, %v498, 920167782
    %v512 = vsel %vm504, %v495, %v511
    %v513 = vsel %vm503, %v510, %v512
    %v514 = vsel %vm502, %v492, %v495
    %v515 = vsel %vm505, %v501, 1326507024
    %v516 = vsel %vm504, %v498, %v515
    %v517 = vsel %vm503, %v514, %v516
    %v518 = vshll.u32 %v478, 8
    %v519 = vmul.u32.u64.compose %v518, %v517
    %v520 = vextract.low.u32 %v519
    %v521 = vextract.high.u32 %v519
    %v522 = vmul.u32.u64.compose %v518, %v513
    %v523 = vextract.low.u32 %v522
    %v524 = vextract.high.u32 %v522
    %v525 = vmul.u32 %v518, %v509
    %v526 = vadd.s32 %v521, %v523
    %vm527 = vc.u32 %v521, %v523
    %v528 = vadd.s32 %v524, 1
    %v529 = vsel %vm527, %v528, %v524
    %v530 = vadd.s32 %v525, %v529
    %v531 = vadd.s32 %v530, 536870912
    %v532 = vshrl.u32 %v531, 30
    %v533 = vshll.u32 %v532, 30
    %v534 = vsub.s32 %v530, %v533
    %vm535 = vcmp.lt.s32.totalorder %v534, 0
    %v536 = vsub.s32 0, %v534
    %v537 = vsel %vm535, %v536, %v534
    %v538 = vclz %v537
    %v539 = vsub.s32 %v538, 2
    %vm540 = vcmp.gt.s32.totalorder 0, %v539
    %v541 = vsel %vm540, 0, %v539
    %v542 = vsub.s32 32, %v541
    %v543 = vshll.u32 %v534, %v541
    %v544 = vshrl.u32 %v526, %v542
    %v545 = vor.u32 %v543, %v544
    %v546 = vsub.s32 4294967266, %v541
    %v547 = vadd.s32 %v546, 127
    %v548 = vshll.u32 %v547, 23
    %v549 = vor.u32 4788187, %v548
    %v550 = vand.u32 2147483647, %v549
    %v552 = vcvt.s32.f32 %v545
    %v553 = vmul.f32 %v552, %v550
    %v554 = vxor.u32 %v553, 2147483648
    %v555 = vsel %vm472, %v554, %v553
    %v556 = vsub.s32 4, %v532
    %v557 = vsel %vm472, %v556, %v532
    %v558 = vsel %vm471, %v469, %v555
    %v559 = vsel %vm471, 0, %v557
    %v560 = vcosq.f32.pop %v558
    %v561 = vsinq.f32.pop %v558
    %vm562 = vweird.f32 %v469
    %v563 = vand.u32 %v559, 3
    %vm564 = vcmp.lt.s32.totalorder %v563, 2
    %vm565 = vcmp.eq.s32.totalorder %v563, 0
    %v566 = vxor.u32 %v561, 2147483648
    %v567 = vsel %vm565, %v560, %v566
    %vm568 = vcmp.eq.s32.totalorder %v563, 2
    %v569 = vxor.u32 %v560, 2147483648
    %v570 = vsel %vm568, %v569, %v561
    %v571 = vsel %vm564, %v567, %v570
    %v572 = vsel %vm562, nan, %v571
    %v573 = vmul.f32 %v572, 0.1
    %v574 = vsub.f32 %v151, %v573
    %v575 = vand.u32 2147483647, %v574
    %vm576 = vcmp.le.f32.partialorder %v575, 0.7853982
    %vm577 = vcmp.lt.s32.totalorder %v574, 0
    %v578 = vand.u32 %v574, 2139095040
    %v579 = vshrl.u32 %v578, 23
    %v580 = vsub.s32 %v579, 127
    %v581 = vand.u32 2147483647, %v574
    %v582 = vand.u32 %v581, 8388607
    %v583 = vor.u32 %v582, 8388608
    %v584 = vsub.s32 0, %v583
    %v585 = vadd.s32 %v580, 1
    %vm586 = vcmp.gt.s32.totalorder %v585, 0
    %v587 = vsel %vm586, %v585, 0
    %v588 = vshrl.u32 %v587, 5
    %v589 = vand.u32 %v587, 31
    %v590 = vsub.s32 32, %v589
    %v591 = vshrl.u32 683565275, %v590
    %v592 = vshll.u32 683565275, %v589
    %v593 = vshrl.u32 2475754826, %v590
    %v594 = vor.u32 %v592, %v593
    %v595 = vshll.u32 2475754826, %v589
    %v596 = vshrl.u32 2131351028, %v590
    %v597 = vor.u32 %v595, %v596
    %v598 = vshll.u32 2131351028, %v589
    %v599 = vshrl.u32 2102212464, %v590
    %v600 = vor.u32 %v598, %v599
    %v601 = vshll.u32 2102212464, %v589
    %v602 = vshrl.u32 920167782, %v590
    %v603 = vor.u32 %v601, %v602
    %v604 = vshll.u32 920167782, %v589
    %v605 = vshrl.u32 1326507024, %v590
    %v606 = vor.u32 %v604, %v605
    %vm607 = vcmp.lt.s32.totalorder %v588, 1
    %vm608 = vcmp.lt.s32.totalorder %v588, 2
    %vm609 = vcmp.lt.s32.totalorder %v588, 3
    %vm610 = vcmp.lt.s32.totalorder %v588, 4
    %v611 = vsel %vm607, %v591, %v594
    %v612 = vsel %vm610, %v600, 2102212464
    %v613 = vsel %vm609, %v597, %v612
    %v614 = vsel %vm608, %v611, %v613
    %v615 = vsel %vm607, %v594, %v597
    %v616 = vsel %vm610, %v603, 920167782
    %v617 = vsel %vm609, %v600, %v616
    %v618 = vsel %vm608, %v615, %v617
    %v619 = vsel %vm607, %v597, %v600
    %v620 = vsel %vm610, %v606, 1326507024
    %v621 = vsel %vm609, %v603, %v620
    %v622 = vsel %vm608, %v619, %v621
    %v623 = vshll.u32 %v583, 8
    %v624 = vmul.u32.u64.compose %v623, %v622
    %v625 = vextract.low.u32 %v624
    %v626 = vextract.high.u32 %v624
    %v627 = vmul.u32.u64.compose %v623, %v618
    %v628 = vextract.low.u32 %v627
    %v629 = vextract.high.u32 %v627
    %v630 = vmul.u32 %v623, %v614
    %v631 = vadd.s32 %v626, %v628
    %vm632 = vc.u32 %v626, %v628
    %v633 = vadd.s32 %v629, 1
    %v634 = vsel %vm632, %v633, %v629
    %v635 = vadd.s32 %v630, %v634
    %v636 = vadd.s32 %v635, 536870912
    %v637 = vshrl.u32 %v636, 30
    %v638 = vshll.u32 %v637, 30
    %v639 = vsub.s32 %v635, %v638
    %vm640 = vcmp.lt.s32.totalorder %v639, 0
    %v641 = vsub.s32 0, %v639
    %v642 = vsel %vm640, %v641, %v639
    %v643 = vclz %v642
    %v644 = vsub.s32 %v643, 2
    %vm645 = vcmp.gt.s32.totalorder 0, %v644
    %v646 = vsel %vm645, 0, %v644
    %v647 = vsub.s32 32, %v646
    %v648 = vshll.u32 %v639, %v646
    %v649 = vshrl.u32 %v631, %v647
    %v650 = vor.u32 %v648, %v649
    %v651 = vsub.s32 4294967266, %v646
    %v652 = vadd.s32 %v651, 127
    %v653 = vshll.u32 %v652, 23
    %v654 = vor.u32 4788187, %v653
    %v655 = vand.u32 2147483647, %v654
    %v657 = vcvt.s32.f32 %v650
    %v658 = vmul.f32 %v657, %v655
    %v659 = vxor.u32 %v658, 2147483648
    %v660 = vsel %vm577, %v659, %v658
    %v661 = vsub.s32 4, %v637
    %v662 = vsel %vm577, %v661, %v637
    %v663 = vsel %vm576, %v574, %v660
    %v664 = vsel %vm576, 0, %v662
    %v665 = vcosq.f32.pop %v663
    %v666 = vsinq.f32.pop %v663
    %vm667 = vweird.f32 %v574
    %v668 = vand.u32 %v664, 3
    %vm669 = vcmp.lt.s32.totalorder %v668, 2
    %vm670 = vcmp.eq.s32.totalorder %v668, 0
    %v671 = vxor.u32 %v666, 2147483648
    %v672 = vsel %vm670, %v665, %v671
    %vm673 = vcmp.eq.s32.totalorder %v668, 2
    %v674 = vxor.u32 %v665, 2147483648
    %v675 = vsel %vm673, %v674, %v666
    %v676 = vsel %vm669, %v672, %v675
    %v677 = vsel %vm667, nan, %v676
    %v678 = vmul.f32 %v677, 0.1
    %v679 = vsub.f32 %v151, %v678
    %v680 = vand.u32 2147483647, %v679
    %vm681 = vcmp.le.f32.partialorder %v680, 0.7853982
    %vm682 = vcmp.lt.s32.totalorder %v679, 0
    %v683 = vand.u32 %v679, 2139095040
    %v684 = vshrl.u32 %v683, 23
    %v685 = vsub.s32 %v684, 127
    %v686 = vand.u32 2147483647, %v679
    %v687 = vand.u32 %v686, 8388607
    %v688 = vor.u32 %v687, 8388608
    %v689 = vsub.s32 0, %v688
    %v690 = vadd.s32 %v685, 1
    %vm691 = vcmp.gt.s32.totalorder %v690, 0
    %v692 = vsel %vm691, %v690, 0
    %v693 = vshrl.u32 %v692, 5
    %v694 = vand.u32 %v692, 31
    %v695 = vsub.s32 32, %v694
    %v696 = vshrl.u32 683565275, %v695
    %v697 = vshll.u32 683565275, %v694
    %v698 = vshrl.u32 2475754826, %v695
    %v699 = vor.u32 %v697, %v698
    %v700 = vshll.u32 2475754826, %v694
    %v701 = vshrl.u32 2131351028, %v695
    %v702 = vor.u32 %v700, %v701
    %v703 = vshll.u32 2131351028, %v694
    %v704 = vshrl.u32 2102212464, %v695
    %v705 = vor.u32 %v703, %v704
    %v706 = vshll.u32 2102212464, %v694
    %v707 = vshrl.u32 920167782, %v695
    %v708 = vor.u32 %v706, %v707
    %v709 = vshll.u32 920167782, %v694
    %v710 = vshrl.u32 1326507024, %v695
    %v711 = vor.u32 %v709, %v710
    %vm712 = vcmp.lt.s32.totalorder %v693, 1
    %vm713 = vcmp.lt.s32.totalorder %v693, 2
    %vm714 = vcmp.lt.s32.totalorder %v693, 3
    %vm715 = vcmp.lt.s32.totalorder %v693, 4
    %v716 = vsel %vm712, %v696, %v699
    %v717 = vsel %vm715, %v705, 2102212464
    %v718 = vsel %vm714, %v702, %v717
    %v719 = vsel %vm713, %v716, %v718
    %v720 = vsel %vm712, %v699, %v702
    %v721 = vsel %vm715, %v708, 920167782
    %v722 = vsel %vm714, %v705, %v721
    %v723 = vsel %vm713, %v720, %v722
    %v724 = vsel %vm712, %v702, %v705
    %v725 = vsel %vm715, %v711, 1326507024
    %v726 = vsel %vm714, %v708, %v725
    %v727 = vsel %vm713, %v724, %v726
    %v728 = vshll.u32 %v688, 8
    %v729 = vmul.u32.u64.compose %v728, %v727
    %v730 = vextract.low.u32 %v729
    %v731 = vextract.high.u32 %v729
    %v732 = vmul.u32.u64.compose %v728, %v723
    %v733 = vextract.low.u32 %v732
    %v734 = vextract.high.u32 %v732
    %v735 = vmul.u32 %v728, %v719
    %v736 = vadd.s32 %v731, %v733
    %vm737 = vc.u32 %v731, %v733
    %v738 = vadd.s32 %v734, 1
    %v739 = vsel %vm737, %v738, %v734
    %v740 = vadd.s32 %v735, %v739
    %v741 = vadd.s32 %v740, 536870912
    %v742 = vshrl.u32 %v741, 30
    %v743 = vshll.u32 %v742, 30
    %v744 = vsub.s32 %v740, %v743
    %vm745 = vcmp.lt.s32.totalorder %v744, 0
    %v746 = vsub.s32 0, %v744
    %v747 = vsel %vm745, %v746, %v744
    %v748 = vclz %v747
    %v749 = vsub.s32 %v748, 2
    %vm750 = vcmp.gt.s32.totalorder 0, %v749
    %v751 = vsel %vm750, 0, %v749
    %v752 = vsub.s32 32, %v751
    %v753 = vshll.u32 %v744, %v751
    %v754 = vshrl.u32 %v736, %v752
    %v755 = vor.u32 %v753, %v754
    %v756 = vsub.s32 4294967266, %v751
    %v757 = vadd.s32 %v756, 127
    %v758 = vshll.u32 %v757, 23
    %v759 = vor.u32 4788187, %v758
    %v760 = vand.u32 2147483647, %v759
    %v762 = vcvt.s32.f32 %v755
    %v763 = vmul.f32 %v762, %v760
    %v764 = vxor.u32 %v763, 2147483648
    %v765 = vsel %vm682, %v764, %v763
    %v766 = vsub.s32 4, %v742
    %v767 = vsel %vm682, %v766, %v742
    %v768 = vsel %vm681, %v679, %v765
    %v769 = vsel %vm681, 0, %v767
    %v770 = vcosq.f32.pop %v768
    %v771 = vsinq.f32.pop %v768
    %vm772 = vweird.f32 %v679
    %v773 = vand.u32 %v769, 3
    %vm774 = vcmp.lt.s32.totalorder %v773, 2
    %vm775 = vcmp.eq.s32.totalorder %v773, 0
    %v776 = vxor.u32 %v771, 2147483648
    %v777 = vsel %vm775, %v770, %v776
    %vm778 = vcmp.eq.s32.totalorder %v773, 2
    %v779 = vxor.u32 %v770, 2147483648
    %v780 = vsel %vm778, %v779, %v771
    %v781 = vsel %vm774, %v777, %v780
    %v782 = vsel %vm772, nan, %v781
    %v783 = vmul.f32 %v782, 0.1
    %v784 = vsub.f32 %v151, %v783
    %v785 = vand.u32 2147483647, %v784
    %vm786 = vcmp.le.f32.partialorder %v785, 0.7853982
    %vm787 = vcmp.lt.s32.totalorder %v784, 0
    %v788 = vand.u32 %v784, 2139095040
    %v789 = vshrl.u32 %v788, 23
    %v790 = vsub.s32 %v789, 127
    %v791 = vand.u32 2147483647, %v784
    %v792 = vand.u32 %v791, 8388607
    %v793 = vor.u32 %v792, 8388608
    %v794 = vsub.s32 0, %v793
    %v795 = vadd.s32 %v790, 1
    %vm796 = vcmp.gt.s32.totalorder %v795, 0
    %v797 = vsel %vm796, %v795, 0
    %v798 = vshrl.u32 %v797, 5
    %v799 = vand.u32 %v797, 31
    %v800 = vsub.s32 32, %v799
    %v801 = vshrl.u32 683565275, %v800
    %v802 = vshll.u32 683565275, %v799
    %v803 = vshrl.u32 2475754826, %v800
    %v804 = vor.u32 %v802, %v803
    %v805 = vshll.u32 2475754826, %v799
    %v806 = vshrl.u32 2131351028, %v800
    %v807 = vor.u32 %v805, %v806
    %v808 = vshll.u32 2131351028, %v799
    %v809 = vshrl.u32 2102212464, %v800
    %v810 = vor.u32 %v808, %v809
    %v811 = vshll.u32 2102212464, %v799
    %v812 = vshrl.u32 920167782, %v800
    %v813 = vor.u32 %v811, %v812
    %v814 = vshll.u32 920167782, %v799
    %v815 = vshrl.u32 1326507024, %v800
    %v816 = vor.u32 %v814, %v815
    %vm817 = vcmp.lt.s32.totalorder %v798, 1
    %vm818 = vcmp.lt.s32.totalorder %v798, 2
    %vm819 = vcmp.lt.s32.totalorder %v798, 3
    %vm820 = vcmp.lt.s32.totalorder %v798, 4
    %v821 = vsel %vm817, %v801, %v804
    %v822 = vsel %vm820, %v810, 2102212464
    %v823 = vsel %vm819, %v807, %v822
    %v824 = vsel %vm818, %v821, %v823
    %v825 = vsel %vm817, %v804, %v807
    %v826 = vsel %vm820, %v813, 920167782
    %v827 = vsel %vm819, %v810, %v826
    %v828 = vsel %vm818, %v825, %v827
    %v829 = vsel %vm817, %v807, %v810
    %v830 = vsel %vm820, %v816, 1326507024
    %v831 = vsel %vm819, %v813, %v830
    %v832 = vsel %vm818, %v829, %v831
    %v833 = vshll.u32 %v793, 8
    %v834 = vmul.u32.u64.compose %v833, %v832
    %v835 = vextract.low.u32 %v834
    %v836 = vextract.high.u32 %v834
    %v837 = vmul.u32.u64.compose %v833, %v828
    %v838 = vextract.low.u32 %v837
    %v839 = vextract.high.u32 %v837
    %v840 = vmul.u32 %v833, %v824
    %v841 = vadd.s32 %v836, %v838
    %vm842 = vc.u32 %v836, %v838
    %v843 = vadd.s32 %v839, 1
    %v844 = vsel %vm842, %v843, %v839
    %v845 = vadd.s32 %v840, %v844
    %v846 = vadd.s32 %v845, 536870912
    %v847 = vshrl.u32 %v846, 30
    %v848 = vshll.u32 %v847, 30
    %v849 = vsub.s32 %v845, %v848
    %vm850 = vcmp.lt.s32.totalorder %v849, 0
    %v851 = vsub.s32 0, %v849
    %v852 = vsel %vm850, %v851, %v849
    %v853 = vclz %v852
    %v854 = vsub.s32 %v853, 2
    %vm855 = vcmp.gt.s32.totalorder 0, %v854
    %v856 = vsel %vm855, 0, %v854
    %v857 = vsub.s32 32, %v856
    %v858 = vshll.u32 %v849, %v856
    %v859 = vshrl.u32 %v841, %v857
    %v860 = vor.u32 %v858, %v859
    %v861 = vsub.s32 4294967266, %v856
    %v862 = vadd.s32 %v861, 127
    %v863 = vshll.u32 %v862, 23
    %v864 = vor.u32 4788187, %v863
    %v865 = vand.u32 2147483647, %v864
    %v867 = vcvt.s32.f32 %v860
    %v868 = vmul.f32 %v867, %v865
    %v869 = vxor.u32 %v868, 2147483648
    %v870 = vsel %vm787, %v869, %v868
    %v871 = vsub.s32 4, %v847
    %v872 = vsel %vm787, %v871, %v847
    %v873 = vsel %vm786, %v784, %v870
    %v874 = vsel %vm786, 0, %v872
    %v875 = vcosq.f32.pop %v873
    %v876 = vsinq.f32.pop %v873
    %vm877 = vweird.f32 %v784
    %v878 = vand.u32 %v874, 3
    %vm879 = vcmp.lt.s32.totalorder %v878, 2
    %vm880 = vcmp.eq.s32.totalorder %v878, 0
    %v881 = vxor.u32 %v876, 2147483648
    %v882 = vsel %vm880, %v875, %v881
    %vm883 = vcmp.eq.s32.totalorder %v878, 2
    %v884 = vxor.u32 %v875, 2147483648
    %v885 = vsel %vm883, %v884, %v876
    %v886 = vsel %vm879, %v882, %v885
    %v887 = vsel %vm877, nan, %v886
    %v888 = vmul.f32 %v887, 0.1
    %v889 = vsub.f32 %v151, %v888
    %v890 = vand.u32 2147483647, %v889
    %vm891 = vcmp.le.f32.partialorder %v890, 0.7853982
    %vm892 = vcmp.lt.s32.totalorder %v889, 0
    %v893 = vand.u32 %v889, 2139095040
    %v894 = vshrl.u32 %v893, 23
    %v895 = vsub.s32 %v894, 127
    %v896 = vand.u32 2147483647, %v889
    %v897 = vand.u32 %v896, 8388607
    %v898 = vor.u32 %v897, 8388608
    %v899 = vsub.s32 0, %v898
    %v900 = vadd.s32 %v895, 1
    %vm901 = vcmp.gt.s32.totalorder %v900, 0
    %v902 = vsel %vm901, %v900, 0
    %v903 = vshrl.u32 %v902, 5
    %v904 = vand.u32 %v902, 31
    %v905 = vsub.s32 32, %v904
    %v906 = vshrl.u32 683565275, %v905
    %v907 = vshll.u32 683565275, %v904
    %v908 = vshrl.u32 2475754826, %v905
    %v909 = vor.u32 %v907, %v908
    %v910 = vshll.u32 2475754826, %v904
    %v911 = vshrl.u32 2131351028, %v905
    %v912 = vor.u32 %v910, %v911
    %v913 = vshll.u32 2131351028, %v904
    %v914 = vshrl.u32 2102212464, %v905
    %v915 = vor.u32 %v913, %v914
    %v916 = vshll.u32 2102212464, %v904
    %v917 = vshrl.u32 920167782, %v905
    %v918 = vor.u32 %v916, %v917
    %v919 = vshll.u32 920167782, %v904
    %v920 = vshrl.u32 1326507024, %v905
    %v921 = vor.u32 %v919, %v920
    %vm922 = vcmp.lt.s32.totalorder %v903, 1
    %vm923 = vcmp.lt.s32.totalorder %v903, 2
    %vm924 = vcmp.lt.s32.totalorder %v903, 3
    %vm925 = vcmp.lt.s32.totalorder %v903, 4
    %v926 = vsel %vm922, %v906, %v909
    %v927 = vsel %vm925, %v915, 2102212464
    %v928 = vsel %vm924, %v912, %v927
    %v929 = vsel %vm923, %v926, %v928
    %v930 = vsel %vm922, %v909, %v912
    %v931 = vsel %vm925, %v918, 920167782
    %v932 = vsel %vm924, %v915, %v931
    %v933 = vsel %vm923, %v930, %v932
    %v934 = vsel %vm922, %v912, %v915
    %v935 = vsel %vm925, %v921, 1326507024
    %v936 = vsel %vm924, %v918, %v935
    %v937 = vsel %vm923, %v934, %v936
    %v938 = vshll.u32 %v898, 8
    %v939 = vmul.u32.u64.compose %v938, %v937
    %v940 = vextract.low.u32 %v939
    %v941 = vextract.high.u32 %v939
    %v942 = vmul.u32.u64.compose %v938, %v933
    %v943 = vextract.low.u32 %v942
    %v944 = vextract.high.u32 %v942
    %v945 = vmul.u32 %v938, %v929
    %v946 = vadd.s32 %v941, %v943
    %vm947 = vc.u32 %v941, %v943
    %v948 = vadd.s32 %v944, 1
    %v949 = vsel %vm947, %v948, %v944
    %v950 = vadd.s32 %v945, %v949
    %v951 = vadd.s32 %v950, 536870912
    %v952 = vshrl.u32 %v951, 30
    %v953 = vshll.u32 %v952, 30
    %v954 = vsub.s32 %v950, %v953
    %vm955 = vcmp.lt.s32.totalorder %v954, 0
    %v956 = vsub.s32 0, %v954
    %v957 = vsel %vm955, %v956, %v954
    %v958 = vclz %v957
    %v959 = vsub.s32 %v958, 2
    %vm960 = vcmp.gt.s32.totalorder 0, %v959
    %v961 = vsel %vm960, 0, %v959
    %v962 = vsub.s32 32, %v961
    %v963 = vshll.u32 %v954, %v961
    %v964 = vshrl.u32 %v946, %v962
    %v965 = vor.u32 %v963, %v964
    %v966 = vsub.s32 4294967266, %v961
    %v967 = vadd.s32 %v966, 127
    %v968 = vshll.u32 %v967, 23
    %v969 = vor.u32 4788187, %v968
    %v970 = vand.u32 2147483647, %v969
    %v972 = vcvt.s32.f32 %v965
    %v973 = vmul.f32 %v972, %v970
    %v974 = vxor.u32 %v973, 2147483648
    %v975 = vsel %vm892, %v974, %v973
    %v976 = vsub.s32 4, %v952
    %v977 = vsel %vm892, %v976, %v952
    %v978 = vsel %vm891, %v889, %v975
    %v979 = vsel %vm891, 0, %v977
    %v980 = vcosq.f32.pop %v978
    %v981 = vsinq.f32.pop %v978
    %vm982 = vweird.f32 %v889
    %v983 = vand.u32 %v979, 3
    %vm984 = vcmp.lt.s32.totalorder %v983, 2
    %vm985 = vcmp.eq.s32.totalorder %v983, 0
    %v986 = vxor.u32 %v981, 2147483648
    %v987 = vsel %vm985, %v980, %v986
    %vm988 = vcmp.eq.s32.totalorder %v983, 2
    %v989 = vxor.u32 %v980, 2147483648
    %v990 = vsel %vm988, %v989, %v981
    %v991 = vsel %vm984, %v987, %v990
    %v992 = vsel %vm982, nan, %v991
    %v993 = vmul.f32 %v992, 0.1
    %v994 = vsub.f32 %v151, %v993
    %v995 = vand.u32 2147483647, %v994
    %vm996 = vcmp.le.f32.partialorder %v995, 0.7853982
    %vm997 = vcmp.lt.s32.totalorder %v994, 0
    %v998 = vand.u32 %v994, 2139095040
    %v999 = vshrl.u32 %v998, 23
    %v1000 = vsub.s32 %v999, 127
    %v1001 = vand.u32 2147483647, %v994
    %v1002 = vand.u32 %v1001, 8388607
    %v1003 = vor.u32 %v1002, 8388608
    %v1004 = vsub.s32 0, %v1003
    %v1005 = vadd.s32 %v1000, 1
    %vm1006 = vcmp.gt.s32.totalorder %v1005, 0
    %v1007 = vsel %vm1006, %v1005, 0
    %v1008 = vshrl.u32 %v1007, 5
    %v1009 = vand.u32 %v1007, 31
    %v1010 = vsub.s32 32, %v1009
    %v1011 = vshrl.u32 683565275, %v1010
    %v1012 = vshll.u32 683565275, %v1009
    %v1013 = vshrl.u32 2475754826, %v1010
    %v1014 = vor.u32 %v1012, %v1013
    %v1015 = vshll.u32 2475754826, %v1009
    %v1016 = vshrl.u32 2131351028, %v1010
    %v1017 = vor.u32 %v1015, %v1016
    %v1018 = vshll.u32 2131351028, %v1009
    %v1019 = vshrl.u32 2102212464, %v1010
    %v1020 = vor.u32 %v1018, %v1019
    %v1021 = vshll.u32 2102212464, %v1009
    %v1022 = vshrl.u32 920167782, %v1010
    %v1023 = vor.u32 %v1021, %v1022
    %v1024 = vshll.u32 920167782, %v1009
    %v1025 = vshrl.u32 1326507024, %v1010
    %v1026 = vor.u32 %v1024, %v1025
    %vm1027 = vcmp.lt.s32.totalorder %v1008, 1
    %vm1028 = vcmp.lt.s32.totalorder %v1008, 2
    %vm1029 = vcmp.lt.s32.totalorder %v1008, 3
    %vm1030 = vcmp.lt.s32.totalorder %v1008, 4
    %v1031 = vsel %vm1027, %v1011, %v1014
    %v1032 = vsel %vm1030, %v1020, 2102212464
    %v1033 = vsel %vm1029, %v1017, %v1032
    %v1034 = vsel %vm1028, %v1031, %v1033
    %v1035 = vsel %vm1027, %v1014, %v1017
    %v1036 = vsel %vm1030, %v1023, 920167782
    %v1037 = vsel %vm1029, %v1020, %v1036
    %v1038 = vsel %vm1028, %v1035, %v1037
    %v1039 = vsel %vm1027, %v1017, %v1020
    %v1040 = vsel %vm1030, %v1026, 1326507024
    %v1041 = vsel %vm1029, %v1023, %v1040
    %v1042 = vsel %vm1028, %v1039, %v1041
    %v1043 = vshll.u32 %v1003, 8
    %v1044 = vmul.u32.u64.compose %v1043, %v1042
    %v1045 = vextract.low.u32 %v1044
    %v1046 = vextract.high.u32 %v1044
    %v1047 = vmul.u32.u64.compose %v1043, %v1038
    %v1048 = vextract.low.u32 %v1047
    %v1049 = vextract.high.u32 %v1047
    %v1050 = vmul.u32 %v1043, %v1034
    %v1051 = vadd.s32 %v1046, %v1048
    %vm1052 = vc.u32 %v1046, %v1048
    %v1053 = vadd.s32 %v1049, 1
    %v1054 = vsel %vm1052, %v1053, %v1049
    %v1055 = vadd.s32 %v1050, %v1054
    %v1056 = vadd.s32 %v1055, 536870912
    %v1057 = vshrl.u32 %v1056, 30
    %v1058 = vshll.u32 %v1057, 30
    %v1059 = vsub.s32 %v1055, %v1058
    %vm1060 = vcmp.lt.s32.totalorder %v1059, 0
    %v1061 = vsub.s32 0, %v1059
    %v1062 = vsel %vm1060, %v1061, %v1059
    %v1063 = vclz %v1062
    %v1064 = vsub.s32 %v1063, 2
    %vm1065 = vcmp.gt.s32.totalorder 0, %v1064
    %v1066 = vsel %vm1065, 0, %v1064
    %v1067 = vsub.s32 32, %v1066
    %v1068 = vshll.u32 %v1059, %v1066
    %v1069 = vshrl.u32 %v1051, %v1067
    %v1070 = vor.u32 %v1068, %v1069
    %v1071 = vsub.s32 4294967266, %v1066
    %v1072 = vadd.s32 %v1071, 127
    %v1073 = vshll.u32 %v1072, 23
    %v1074 = vor.u32 4788187, %v1073
    %v1075 = vand.u32 2147483647, %v1074
    %v1077 = vcvt.s32.f32 %v1070
    %v1078 = vmul.f32 %v1077, %v1075
    %v1079 = vxor.u32 %v1078, 2147483648
    %v1080 = vsel %vm997, %v1079, %v1078
    %v1081 = vsub.s32 4, %v1057
    %v1082 = vsel %vm997, %v1081, %v1057
    %v1083 = vsel %vm996, %v994, %v1080
    %v1084 = vsel %vm996, 0, %v1082
    %v1085 = vcosq.f32.pop %v1083
    %v1086 = vsinq.f32.pop %v1083
    %vm1087 = vweird.f32 %v994
    %v1088 = vand.u32 %v1084, 3
    %vm1089 = vcmp.lt.s32.totalorder %v1088, 2
    %vm1090 = vcmp.eq.s32.totalorder %v1088, 0
    %v1091 = vxor.u32 %v1086, 2147483648
    %v1092 = vsel %vm1090, %v1085, %v1091
    %vm1093 = vcmp.eq.s32.totalorder %v1088, 2
    %v1094 = vxor.u32 %v1085, 2147483648
    %v1095 = vsel %vm1093, %v1094, %v1086
    %v1096 = vsel %vm1089, %v1092, %v1095
    %v1097 = vsel %vm1087, nan, %v1096
    %v1098 = vmul.f32 %v1097, 0.1
    %v1099 = vsub.f32 %v151, %v1098
    %v1100 = vmul.f32 %v1099, 0.5
    %v1101 = vand.u32 2147483647, %v1100
    %vm1102 = vcmp.le.f32.partialorder %v1101, 0.7853982
    %vm1103 = vcmp.lt.s32.totalorder %v1100, 0
    %v1104 = vand.u32 %v1100, 2139095040
    %v1105 = vshrl.u32 %v1104, 23
    %v1106 = vsub.s32 %v1105, 127
    %v1107 = vand.u32 2147483647, %v1100
    %v1108 = vand.u32 %v1107, 8388607
    %v1109 = vor.u32 %v1108, 8388608
    %v1110 = vsub.s32 0, %v1109
    %v1111 = vadd.s32 %v1106, 1
    %vm1112 = vcmp.gt.s32.totalorder %v1111, 0
    %v1113 = vsel %vm1112, %v1111, 0
    %v1114 = vshrl.u32 %v1113, 5
    %v1115 = vand.u32 %v1113, 31
    %v1116 = vsub.s32 32, %v1115
    %v1117 = vshrl.u32 683565275, %v1116
    %v1118 = vshll.u32 683565275, %v1115
    %v1119 = vshrl.u32 2475754826, %v1116
    %v1120 = vor.u32 %v1118, %v1119
    %v1121 = vshll.u32 2475754826, %v1115
    %v1122 = vshrl.u32 2131351028, %v1116
    %v1123 = vor.u32 %v1121, %v1122
    %v1124 = vshll.u32 2131351028, %v1115
    %v1125 = vshrl.u32 2102212464, %v1116
    %v1126 = vor.u32 %v1124, %v1125
    %v1127 = vshll.u32 2102212464, %v1115
    %v1128 = vshrl.u32 920167782, %v1116
    %v1129 = vor.u32 %v1127, %v1128
    %v1130 = vshll.u32 920167782, %v1115
    %v1131 = vshrl.u32 1326507024, %v1116
    %v1132 = vor.u32 %v1130, %v1131
    %vm1133 = vcmp.lt.s32.totalorder %v1114, 1
    %vm1134 = vcmp.lt.s32.totalorder %v1114, 2
    %vm1135 = vcmp.lt.s32.totalorder %v1114, 3
    %vm1136 = vcmp.lt.s32.totalorder %v1114, 4
    %v1137 = vsel %vm1133, %v1117, %v1120
    %v1138 = vsel %vm1136, %v1126, 2102212464
    %v1139 = vsel %vm1135, %v1123, %v1138
    %v1140 = vsel %vm1134, %v1137, %v1139
    %v1141 = vsel %vm1133, %v1120, %v1123
    %v1142 = vsel %vm1136, %v1129, 920167782
    %v1143 = vsel %vm1135, %v1126, %v1142
    %v1144 = vsel %vm1134, %v1141, %v1143
    %v1145 = vsel %vm1133, %v1123, %v1126
    %v1146 = vsel %vm1136, %v1132, 1326507024
    %v1147 = vsel %vm1135, %v1129, %v1146
    %v1148 = vsel %vm1134, %v1145, %v1147
    %v1149 = vshll.u32 %v1109, 8
    %v1150 = vmul.u32.u64.compose %v1149, %v1148
    %v1151 = vextract.low.u32 %v1150
    %v1152 = vextract.high.u32 %v1150
    %v1153 = vmul.u32.u64.compose %v1149, %v1144
    %v1154 = vextract.low.u32 %v1153
    %v1155 = vextract.high.u32 %v1153
    %v1156 = vmul.u32 %v1149, %v1140
    %v1157 = vadd.s32 %v1152, %v1154
    %vm1158 = vc.u32 %v1152, %v1154
    %v1159 = vadd.s32 %v1155, 1
    %v1160 = vsel %vm1158, %v1159, %v1155
    %v1161 = vadd.s32 %v1156, %v1160
    %v1162 = vadd.s32 %v1161, 536870912
    %v1163 = vshrl.u32 %v1162, 30
    %v1164 = vshll.u32 %v1163, 30
    %v1165 = vsub.s32 %v1161, %v1164
    %vm1166 = vcmp.lt.s32.totalorder %v1165, 0
    %v1167 = vsub.s32 0, %v1165
    %v1168 = vsel %vm1166, %v1167, %v1165
    %v1169 = vclz %v1168
    %v1170 = vsub.s32 %v1169, 2
    %vm1171 = vcmp.gt.s32.totalorder 0, %v1170
    %v1172 = vsel %vm1171, 0, %v1170
    %v1173 = vsub.s32 32, %v1172
    %v1174 = vshll.u32 %v1165, %v1172
    %v1175 = vshrl.u32 %v1157, %v1173
    %v1176 = vor.u32 %v1174, %v1175
    %v1177 = vsub.s32 4294967266, %v1172
    %v1178 = vadd.s32 %v1177, 127
    %v1179 = vshll.u32 %v1178, 23
    %v1180 = vor.u32 4788187, %v1179
    %v1181 = vand.u32 2147483647, %v1180
    %v1183 = vcvt.s32.f32 %v1176
    %v1184 = vmul.f32 %v1183, %v1181
    %v1185 = vxor.u32 %v1184, 2147483648
    %v1186 = vsel %vm1103, %v1185, %v1184
    %v1187 = vsub.s32 4, %v1163
    %v1188 = vsel %vm1103, %v1187, %v1163
    %v1189 = vsel %vm1102, %v1100, %v1186
    %v1190 = vsel %vm1102, 0, %v1188
    %v1191 = vcosq.f32.pop %v1189
    %v1192 = vsinq.f32.pop %v1189
    %vm1193 = vweird.f32 %v1100
    %v1194 = vadd.s32 %v1190, 3
    %v1195 = vand.u32 %v1194, 3
    %vm1196 = vcmp.lt.s32.totalorder %v1195, 2
    %vm1197 = vcmp.eq.s32.totalorder %v1195, 0
    %v1198 = vxor.u32 %v1192, 2147483648
    %v1199 = vsel %vm1197, %v1191, %v1198
    %vm1200 = vcmp.eq.s32.totalorder %v1195, 2
    %v1201 = vxor.u32 %v1191, 2147483648
    %v1202 = vsel %vm1200, %v1201, %v1192
    %v1203 = vsel %vm1196, %v1199, %v1202
    %v1204 = vsel %vm1193, nan, %v1203
    %v1205 = vmul.f32 %v1204, %v1204
    %v1206 = vmul.f32 %v1205, 0.1
    %v1207 = vld [vmem:[#allocation7] sm:$0xff]
    %v1208 = vld [vmem:[#allocation7 + $0x8] sm:$0xff]
    %v1209 = vld [vmem:[#allocation7 + $0x10] sm:$0xff]
    %v1210 = vld [vmem:[#allocation7 + $0x18] sm:$0xff]
    %v1211 = vld [vmem:[#allocation7 + $0x20] sm:$0xff]
    %v1212 = vld [vmem:[#allocation7 + $0x28] sm:$0xff]
    %v1213 = vld [vmem:[#allocation7 + $0x30] sm:$0xff]
    %v1214 = vld [vmem:[#allocation7 + $0x38] sm:$0xff]
    %v1215 = vld [vmem:[#allocation7 + $0x40] sm:$0xff]
    %v1216 = vld [vmem:[#allocation7 + $0x48] sm:$0xff]
    %v1217 = vld [vmem:[#allocation7 + $0x50] sm:$0xff]
    %v1218 = vld [vmem:[#allocation7 + $0x58] sm:$0xff]
    %v1219 = vld [vmem:[#allocation7 + $0x60] sm:$0xff]
    %v1220 = vld [vmem:[#allocation7 + $0x68] sm:$0xff]
    %v1221 = vld [vmem:[#allocation7 + $0x70] sm:$0xff]
    %v1222 = vld [vmem:[#allocation7 + $0x78] sm:$0xff]
    %v1223 = vld [vmem:[%s4] sm:$0x1]
    %v1225 = vlaneseq
    %v1226 = vshrl.u32 %v1225, 7
    %v1227 = vsub.s32 0, %v1226
    %v1228 = vrot.slane %v1223, %v1227
    %1230 = vmatprep.subr.mxu0 0.0
    %1231 = vmatpush1.msra.mxu0 %v1207
    %1232 = vmatprep.subr.mxu0 0.0
    %1233 = vmatpush1.msra.mxu0 %v1208
    %1234 = vmatprep.subr.mxu0 0.0
    %1235 = vmatpush1.msra.mxu0 %v1209
    %1236 = vmatprep.subr.mxu0 0.0
    %1237 = vmatpush1.msra.mxu0 %v1210
    %1238 = vmatprep.subr.mxu0 0.0
    %1239 = vmatpush1.msra.mxu0 %v1211
    %1240 = vmatprep.subr.mxu0 0.0
    %1241 = vmatpush1.msra.mxu0 %v1212
    %1242 = vmatprep.subr.mxu0 0.0
    %1243 = vmatpush1.msra.mxu0 %v1213
    %1244 = vmatprep.subr.mxu0 0.0
    %1245 = vmatpush1.msra.mxu0 %v1214
    %1246 = vmatprep.subr.mxu0 0.0
    %1247 = vmatpush1.msra.mxu0 %v1215
    %1248 = vmatprep.subr.mxu0 0.0
    %1249 = vmatpush1.msra.mxu0 %v1216
    %1250 = vmatprep.subr.mxu0 0.0
    %1251 = vmatpush1.msra.mxu0 %v1217
    %1252 = vmatprep.subr.mxu0 0.0
    %1253 = vmatpush1.msra.mxu0 %v1218
    %1254 = vmatprep.subr.mxu0 0.0
    %1255 = vmatpush1.msra.mxu0 %v1219
    %1256 = vmatprep.subr.mxu0 0.0
    %1257 = vmatpush1.msra.mxu0 %v1220
    %1258 = vmatprep.subr.mxu0 0.0
    %1259 = vmatpush1.msra.mxu0 %v1221
    %1260 = vmatprep.subr.mxu0 0.0
    %1261 = vmatpush1.msra.mxu0 %v1222
    %1262 = vmatprep.subr.mxu0 0.0
    %1263 = vmatpush1.msra.mxu0 0.0
    %1264 = vmatprep.subr.mxu0 0.0
    %1265 = vmatpush1.msra.mxu0 0.0
    %1266 = vmatprep.subr.mxu0 0.0
    %1267 = vmatpush1.msra.mxu0 0.0
    %1268 = vmatprep.subr.mxu0 0.0
    %1269 = vmatpush1.msra.mxu0 0.0
    %1270 = vmatprep.subr.mxu0 0.0
    %1271 = vmatpush1.msra.mxu0 0.0
    %1272 = vmatprep.subr.mxu0 0.0
    %1273 = vmatpush1.msra.mxu0 0.0
    %1274 = vmatprep.subr.mxu0 0.0
    %1275 = vmatpush1.msra.mxu0 0.0
    %1276 = vmatprep.subr.mxu0 0.0
    %1277 = vmatpush1.msra.mxu0 0.0
    %1278 = vmatprep.subr.mxu0 0.0
    %1279 = vmatpush1.msra.mxu0 0.0
    %1280 = vmatprep.subr.mxu0 0.0
    %1281 = vmatpush1.msra.mxu0 0.0
    %1282 = vmatprep.subr.mxu0 0.0
    %1283 = vmatpush1.msra.mxu0 0.0
    %1284 = vmatprep.subr.mxu0 0.0
    %1285 = vmatpush1.msra.mxu0 0.0
    %1286 = vmatprep.subr.mxu0 0.0
    %1287 = vmatpush1.msra.mxu0 0.0
    %1288 = vmatprep.subr.mxu0 0.0
    %1289 = vmatpush1.msra.mxu0 0.0
    %1290 = vmatprep.subr.mxu0 0.0
    %1291 = vmatpush1.msra.mxu0 0.0
    %1292 = vmatprep.subr.mxu0 0.0
    %1293 = vmatpush1.msra.mxu0 0.0
    %1294 = vmatprep.mubr.f32.mxu0 0.0
    %1295 = vmatmul.mubr.f32.gmra.mrb[0].mxu0 %v1206
    %v1296 = vpop.f32.mrb[0].mxu0
    %v1297 = vadd.f32 %v1228, %v1296
    %v1298 = vpop.f32.mrb[0].mxu0
    %1299 = vdwg.mxu0
    %1300 = vst [vmem:[#allocation8] sm:$0xff] %v1297
    // Predicated region
    $region34: #{tpu_custom_call.1} parent=1 // pred_check
      _
    $region35: #{tpu_custom_call.1} parent=1 // pred_check_branch
      %1302 = sbr.rel (0) target = $region37
    $region36: #{tpu_custom_call.1} parent=1 // pred_region
      %s1304 = ssub.s32 128, 128
      %1305 = vsyncadd [#allocation4], %s1304
      %s1307 = sshll.u32 [#allocation8], 4
      %s1308 = int_to_ptr.vmem [resolvable:$true] %s1307
      %1310 = dma.vmem_to_hbm [thread:$0]  %s1308, 128, %s5, [#allocation4]
    $region37: #{tpu_custom_call.1} parent=1 // pred_fallthru
      _
    // Predicated region
    $region38: #{tpu_custom_call.1} parent=1 // pred_check
      _
    $region39: #{tpu_custom_call.1} parent=1 // pred_check_branch
      %1312 = sbr.rel (0) target = $region41
    $region40: #{tpu_custom_call.1} parent=1 // pred_region
      %1313 = dma.done [#allocation4], 128
    $region41: #{tpu_custom_call.1} parent=1 // pred_fallthru
      _
    %1314 = vsyncpa [#allocation3], 1
    %1315 = vsyncpa [#allocation6], 1
    %1316 = vsyncpa [#allocation4], 1

</llo_original>
